<compile_context>
chip_gen: v6e
topology: v6e:2x2x1
jax: 0.10.0
libtpu: 0.0.40
codegen_flags: <defaults>
</compile_context>

<pallas_src>
import functools

import jax
import jax.numpy as jnp
from jax.experimental import pallas as pl
from jax.experimental.pallas import tpu as pltpu

NEG_SLOPE = 0.01            # nn.LeakyReLU() default
BN_EPS = 1e-5               # nn.BatchNorm2d default
VMEM_LIMIT = 48 * 1024 * 1024


def _cparams(n_grid_axes):
    return pltpu.CompilerParams(
        dimension_semantics=("parallel",) * n_grid_axes,
        vmem_limit_bytes=VMEM_LIMIT)


# ------------------------------ tile choice --------------------------------

def _pick_row_tile(H, W, max_pixels):
    """Largest divisor TH of H with TH * W <= max_pixels (falls back to 1)."""
    best = 1
    for th in range(1, H + 1):
        if H % th == 0 and th * W <= max_pixels:
            best = th
    return best


def _pick_flat_tile(n, max_elems):
    """Largest divisor T of n with T % 8 == 0 (or T == n) and T <= max_elems."""
    cands = [t for t in range(8, n + 1, 8) if n % t == 0 and t <= max_elems]
    if n <= max_elems:
        cands.append(n)
    return max(cands) if cands else n


# ----------------------------- Pallas kernels ------------------------------

def _make_conv3x3_bn_lrelu_kernel(n_in, TH, W):
    """Fused [concat ->] Conv3x3(pad=1) -> eval-BN -> LeakyReLU kernel.

    Refs (inputs then output):
      x_j   : (1, 1, TH+2, W+2, Cin_j) bf16 halo row tile, j = 0..n_in-1
      w_j   : (9*Cin_j, Cout)          bf16 fused tap weights (resident)
      scale : (1, Cout) f32 folded BN scale
      shift : (1, Cout) f32 folded conv-bias + BN shift
      out   : (1, 1, TH*W, Cout)
    """
    def kernel(*refs):
        x_refs = refs[:n_in]
        w_refs = refs[n_in:2 * n_in]
        sc_ref = refs[2 * n_in]
        sh_ref = refs[2 * n_in + 1]
        o_ref = refs[2 * n_in + 2]

        cout = o_ref.shape[-1]
        acc = jnp.zeros((TH * W, cout), jnp.float32)
        for j in range(n_in):
            x = x_refs[j][0, 0]                        # (TH+2, W+2, Cj) bf16
            cj = x.shape[-1]
            # Build (TH*W, 9*Cj) patch matrix from 9 shifted static slices.
            # Column order: tap-major (kh*3+kw), channel-minor.
            taps = [x[kh:kh + TH, kw:kw + W, :]
                    for kh in range(3) for kw in range(3)]
            p = jnp.concatenate(taps, axis=-1)         # (TH, W, 9*Cj)
            p = p.reshape(TH * W, 9 * cj)
            acc += jnp.dot(p, w_refs[j][...],
                           preferred_element_type=jnp.float32)
        y = acc * sc_ref[...] + sh_ref[...]            # f32 epilogue
        y = jnp.where(y > 0, y, NEG_SLOPE * y)         # LeakyReLU(0.01)
        o_ref[0, 0] = y.astype(o_ref.dtype)

    return kernel


def _convt2x2_kernel(x_ref, w_ref, b_ref, o_ref):
    # x_ref: (1, T, Cin) bf16 ; w_ref: (Cin, 4*Cout) bf16 ; b_ref: (1, 4*Cout) f32
    # o_ref: (1, T, 4*Cout) lane-dense fused output (interleaved in wrapper).
    y = jnp.dot(x_ref[0], w_ref[...],
                preferred_element_type=jnp.float32) + b_ref[...]
    o_ref[0] = y.astype(o_ref.dtype)


# ------------------------------ op wrappers --------------------------------

def conv3x3_bn_lrelu(xs, w_oihw, conv_bias, gamma, beta, mean, var, *,
                     row_tile_pixels=1024, out_dtype=jnp.bfloat16):
    """Conv2d(k=3,s=1,p=1) over the channel-concat of `xs` (list of NHWC),
    + eval-mode BatchNorm2d + LeakyReLU.  Returns NHWC in `out_dtype`."""
    B, H, W, _ = xs[0].shape
    cins = [x.shape[-1] for x in xs]
    assert sum(cins) == w_oihw.shape[1], "weight Cin must match concat channels"
    Cout = w_oihw.shape[0]

    TH = _pick_row_tile(H, W, row_tile_pixels)
    n_tiles = H // TH
    THP, Wp = TH + 2, W + 2

    # Halo row tiles, bf16: (B, n_tiles, TH+2, W+2, Cin_j).
    xts = []
    for x in xs:
        xp = jnp.pad(x.astype(jnp.bfloat16), ((0, 0), (1, 1), (1, 1), (0, 0)))
        xt = jnp.stack([xp[:, i * TH:i * TH + THP] for i in range(n_tiles)],
                       axis=1)
        xts.append(xt)

    # Per-input fused tap weights (9*Cin_j, Cout); row = (kh*3+kw)*Cin_j + ci.
    wks, off = [], 0
    for cj in cins:
        wj = w_oihw[:, off:off + cj]                   # (Cout, cj, 3, 3)
        off += cj
        wks.append(jnp.transpose(wj, (2, 3, 1, 0))
                   .reshape(9 * cj, Cout).astype(jnp.bfloat16))

    scale = (gamma / jnp.sqrt(var + BN_EPS)).astype(jnp.float32)
    shift = ((conv_bias - mean) * scale + beta).astype(jnp.float32)

    in_specs = (
        [pl.BlockSpec((1, 1, THP, Wp, cj), lambda b, t: (b, t, 0, 0, 0))
         for cj in cins]
        + [pl.BlockSpec((9 * cj, Cout), lambda b, t: (0, 0)) for cj in cins]
        + [pl.BlockSpec((1, Cout), lambda b, t: (0, 0)),
           pl.BlockSpec((1, Cout), lambda b, t: (0, 0))])

    out = pl.pallas_call(
        _make_conv3x3_bn_lrelu_kernel(len(xs), TH, W),
        out_shape=jax.ShapeDtypeStruct((B, n_tiles, TH * W, Cout), out_dtype),
        grid=(B, n_tiles),
        in_specs=in_specs,
        out_specs=pl.BlockSpec((1, 1, TH * W, Cout), lambda b, t: (b, t, 0, 0)),
        compiler_params=_cparams(2),
    )(*xts, *wks, scale.reshape(1, Cout), shift.reshape(1, Cout))

    return out.reshape(B, H, W, Cout)


def conv_transpose2x2(x, w_iokk, bias, *, row_tile_pixels=1024,
                      out_dtype=jnp.bfloat16):
    """ConvTranspose2d(kernel=2, stride=2).  x: NHWC -> NHWC, 2x spatial."""
    B, H, W, Cin = x.shape
    Cout = w_iokk.shape[1]
    HW = H * W
    T = _pick_flat_tile(HW, row_tile_pixels)
    n_t = HW // T

    xf = x.astype(jnp.bfloat16).reshape(B, HW, Cin)
    # (Cin, 4*Cout); column = (kh*2 + kw)*Cout + co.
    wk = jnp.transpose(w_iokk, (0, 2, 3, 1)).reshape(Cin, 4 * Cout)
    wk = wk.astype(jnp.bfloat16)
    bk = jnp.tile(bias.astype(jnp.float32), 4).reshape(1, 4 * Cout)

    out = pl.pallas_call(
        _convt2x2_kernel,
        out_shape=jax.ShapeDtypeStruct((B, HW, 4 * Cout), out_dtype),
        grid=(B, n_t),
        in_specs=[pl.BlockSpec((1, T, Cin), lambda b, t: (b, t, 0)),
                  pl.BlockSpec((Cin, 4 * Cout), lambda b, t: (0, 0)),
                  pl.BlockSpec((1, 4 * Cout), lambda b, t: (0, 0))],
        out_specs=pl.BlockSpec((1, T, 4 * Cout), lambda b, t: (b, t, 0)),
        compiler_params=_cparams(2),
    )(xf, wk, bk)

    # interleave glue: out[b, h*W+w, (kh*2+kw)*Cout+co] -> y[b, 2h+kh, 2w+kw, co]
    out = out.reshape(B, H, W, 2, 2, Cout)
    out = jnp.transpose(out, (0, 1, 3, 2, 4, 5)).reshape(B, 2 * H, 2 * W, Cout)
    return out


# ------------------------- parameters & forward ----------------------------

def init_upsample_bn_params(key, skip_input, output_features, input_features):
    def conv_bn(k, cin, cout):
        ks = jax.random.split(k, 6)
        fan_in = cin * 9
        return dict(
            w=jax.random.normal(ks[0], (cout, cin, 3, 3), jnp.float32)
              / jnp.sqrt(float(fan_in)),
            b=0.05 * jax.random.normal(ks[1], (cout,), jnp.float32),
            gamma=1.0 + 0.1 * jax.random.normal(ks[2], (cout,), jnp.float32),
            beta=0.1 * jax.random.normal(ks[3], (cout,), jnp.float32),
            mean=0.1 * jax.random.normal(ks[4], (cout,), jnp.float32),
            var=jnp.abs(1.0 + 0.1 * jax.random.normal(ks[5], (cout,), jnp.float32)),
        )

    k_ctw, k_ctb, k_a, k_b = jax.random.split(key, 4)
    c = input_features
    return dict(
        ct=dict(w=jax.random.normal(k_ctw, (c, c, 2, 2), jnp.float32)
                  / jnp.sqrt(4.0 * c),
                b=0.05 * jax.random.normal(k_ctb, (c,), jnp.float32)),
        conv_a=conv_bn(k_a, skip_input, output_features),
        conv_b=conv_bn(k_b, output_features, output_features),
    )


def upsample_bn_forward(params, x_nchw, concat_with_nchw, *, row_tile_pixels=1024):
    """UpSampleBN.forward: ConvT(2,s2) -> cat -> (Conv3x3 + BN + LeakyReLU) x2."""
    x = jnp.transpose(x_nchw, (0, 2, 3, 1))
    skip = jnp.transpose(concat_with_nchw, (0, 2, 3, 1))

    up = conv_transpose2x2(x, params["ct"]["w"], params["ct"]["b"],
                           row_tile_pixels=row_tile_pixels,
                           out_dtype=jnp.bfloat16)

    pa = params["conv_a"]
    # cat([up, skip], C) + conv fused: conv weight split along Cin in wrapper.
    h = conv3x3_bn_lrelu([up, skip], pa["w"], pa["b"], pa["gamma"], pa["beta"],
                         pa["mean"], pa["var"],
                         row_tile_pixels=row_tile_pixels, out_dtype=jnp.bfloat16)

    pb = params["conv_b"]
    out = conv3x3_bn_lrelu([h], pb["w"], pb["b"], pb["gamma"], pb["beta"],
                           pb["mean"], pb["var"],
                           row_tile_pixels=row_tile_pixels, out_dtype=jnp.float32)
    return jnp.transpose(out, (0, 3, 1, 2))


# ------------------------- pure-JAX f32 reference ---------------------------

def _ref_conv_bn_lrelu(x_nchw, p):
    y = jax.lax.conv_general_dilated(
        x_nchw, p["w"], window_strides=(1, 1), padding=((1, 1), (1, 1)),
        dimension_numbers=("NCHW", "OIHW", "NCHW"))
    y = y + p["b"][None, :, None, None]
    scale = p["gamma"] / jnp.sqrt(p["var"] + BN_EPS)
    y = (y - p["mean"][None, :, None, None]) * scale[None, :, None, None] \
        + p["beta"][None, :, None, None]
    return jnp.where(y > 0, y, NEG_SLOPE * y)


def upsample_bn_reference(params, x_nchw, concat_with_nchw):
    w, b = params["ct"]["w"], params["ct"]["b"]
    y = jnp.einsum("bchw,cdkl->bdhwkl", x_nchw, w)
    B, Cd, H, W = y.shape[:4]
    up = jnp.transpose(y, (0, 1, 2, 4, 3, 5)).reshape(B, Cd, 2 * H, 2 * W)
    up = up + b[None, :, None, None]
    f = jnp.concatenate([up, concat_with_nchw], axis=1)
    h = _ref_conv_bn_lrelu(f, params["conv_a"])
    return _ref_conv_bn_lrelu(h, params["conv_b"])


# ---------------------------------- main ------------------------------------

if __name__ == "__main__":
    key = jax.random.PRNGKey(0)
    B = 2
    input_features = 32        # channels of x
    skip_channels = 16         # channels of concat_with
    skip_input = input_features + skip_channels
    output_features = 32
    H, W = 8, 8                # x spatial; upsampled to 16x16

    kx, ks, kp = jax.random.split(key, 3)
    x = jax.random.normal(kx, (B, input_features, H, W), jnp.float32)
    concat_with = jax.random.normal(
        ks, (B, skip_channels, 2 * H, 2 * W), jnp.float32)
    params = init_upsample_bn_params(kp, skip_input, output_features,
                                     input_features)

    # Small row-tile budget so the (batch, row-tile) grid actually has >1
    # spatial step at these toy shapes (production would use 512-2048).
    fwd = jax.jit(functools.partial(upsample_bn_forward, row_tile_pixels=64))
    out = jax.block_until_ready(fwd(params, x, concat_with))

    assert out.shape == (B, output_features, 2 * H, 2 * W), out.shape
    assert bool(jnp.all(jnp.isfinite(out)))

    ref = upsample_bn_reference(params, x, concat_with)
    err = float(jnp.max(jnp.abs(out - ref)))
    scl = float(jnp.max(jnp.abs(ref))) + 1e-6
    assert err <= 0.1 * scl, (err, scl)
    print("KERNEL_OK")
</pallas_src>

<mosaic_0001>
module attributes {stable_mosaic.version = 11 : i64} {
  func.func @_convt2x2_kernel(%arg0: i32, %arg1: i32, %arg2: memref<1x64x32xbf16, #tpu.memory_space<vmem>>, %arg3: memref<32x128xbf16, #tpu.memory_space<vmem>>, %arg4: memref<1x128xf32, #tpu.memory_space<vmem>>, %arg5: memref<1x64x128xbf16, #tpu.memory_space<vmem>>) attributes {dimension_semantics = [#tpu.dimension_semantics<parallel>, #tpu.dimension_semantics<parallel>], iteration_bounds = array<i64: 2, 1>, scalar_prefetch = 0 : i64, scratch_operands = 0 : i64, tpu.core_type = #tpu.core_type<tc>, window_params = [{transform_indices = @transform_0, window_bounds = array<i64: 1, 64, 32>}, {pipeline_mode = #tpu.pipeline_mode<synchronous>, transform_indices = @transform_1, window_bounds = array<i64: 32, 128>}, {pipeline_mode = #tpu.pipeline_mode<synchronous>, transform_indices = @transform_2, window_bounds = array<i64: 1, 128>}, {transform_indices = @transform_3, window_bounds = array<i64: 1, 64, 128>}]} {
    %c0 = arith.constant 0 : index
    %c0_0 = arith.constant 0 : index
    %c0_1 = arith.constant 0 : index
    %0 = vector.load %arg2[%c0, %c0_0, %c0_1] : memref<1x64x32xbf16, #tpu.memory_space<vmem>>, vector<1x64x32xbf16>
    %1 = vector.shape_cast %0 : vector<1x64x32xbf16> to vector<64x32xbf16>
    %c0_2 = arith.constant 0 : index
    %c0_3 = arith.constant 0 : index
    %2 = vector.load %arg3[%c0_2, %c0_3] : memref<32x128xbf16, #tpu.memory_space<vmem>>, vector<32x128xbf16>
    %cst = arith.constant dense<0.000000e+00> : vector<64x128xf32>
    %3 = tpu.matmul %1, %2, %cst {dimension_numbers = #tpu.dot_dimension_numbers<[1], [0], [0], [1], [0, 0, 1, 1], [], []>} : vector<64x32xbf16>, vector<32x128xbf16>, vector<64x128xf32> -> vector<64x128xf32>
    %c0_4 = arith.constant 0 : index
    %c0_5 = arith.constant 0 : index
    %4 = vector.load %arg4[%c0_4, %c0_5] : memref<1x128xf32, #tpu.memory_space<vmem>>, vector<1x128xf32>
    %5 = vector.broadcast %4 : vector<1x128xf32> to vector<64x128xf32>
    %6 = arith.addf %3, %5 : vector<64x128xf32>
    %7 = arith.truncf %6 : vector<64x128xf32> to vector<64x128xbf16>
    %c0_6 = arith.constant 0 : index
    %c0_7 = arith.constant 0 : index
    %c0_8 = arith.constant 0 : index
    %8 = vector.load %arg5[%c0_6, %c0_7, %c0_8] : memref<1x64x128xbf16, #tpu.memory_space<vmem>>, vector<1x64x128xbf16>
    %9 = vector.shape_cast %8 : vector<1x64x128xbf16> to vector<64x128xbf16>
    %10 = vector.shape_cast %7 : vector<64x128xbf16> to vector<1x64x128xbf16>
    tpu.vector_store %arg5[%c0_6, %c0_7, %c0_8], %10 {strides = array<i32>} : memref<1x64x128xbf16, #tpu.memory_space<vmem>>, vector<1x64x128xbf16>,
    return
  }
  func.func @transform_0(%arg0: i32, %arg1: i32) -> (i32, i32, i32) {
    %c0_i32 = arith.constant 0 : i32
    %c0_i32_0 = arith.constant 0 : i32
    return %arg0, %arg1, %c0_i32 : i32, i32, i32
  }
  func.func @transform_1(%arg0: i32, %arg1: i32) -> (i32, i32) {
    %c0_i32 = arith.constant 0 : i32
    %c0_i32_0 = arith.constant 0 : i32
    %c0_i32_1 = arith.constant 0 : i32
    return %c0_i32, %c0_i32_0 : i32, i32
  }
  func.func @transform_2(%arg0: i32, %arg1: i32) -> (i32, i32) {
    %c0_i32 = arith.constant 0 : i32
    %c0_i32_0 = arith.constant 0 : i32
    %c0_i32_1 = arith.constant 0 : i32
    return %c0_i32, %c0_i32_0 : i32, i32
  }
  func.func @transform_3(%arg0: i32, %arg1: i32) -> (i32, i32, i32) {
    %c0_i32 = arith.constant 0 : i32
    %c0_i32_0 = arith.constant 0 : i32
    return %arg0, %arg1, %c0_i32 : i32, i32, i32
  }
}

module attributes {stable_mosaic.version = 11 : i64} {
  func.func @kernel(%arg0: i32, %arg1: i32, %arg2: memref<1x1x6x18x32xbf16, #tpu.memory_space<vmem>>, %arg3: memref<288x32xbf16, #tpu.memory_space<vmem>>, %arg4: memref<1x32xf32, #tpu.memory_space<vmem>>, %arg5: memref<1x32xf32, #tpu.memory_space<vmem>>, %arg6: memref<1x1x64x32xf32, #tpu.memory_space<vmem>>) attributes {dimension_semantics = [#tpu.dimension_semantics<parallel>, #tpu.dimension_semantics<parallel>], iteration_bounds = array<i64: 2, 4>, scalar_prefetch = 0 : i64, scratch_operands = 0 : i64, tpu.core_type = #tpu.core_type<tc>, window_params = [{transform_indices = @transform_0, window_bounds = array<i64: 1, 1, 6, 18, 32>}, {pipeline_mode = #tpu.pipeline_mode<synchronous>, transform_indices = @transform_1, window_bounds = array<i64: 288, 32>}, {pipeline_mode = #tpu.pipeline_mode<synchronous>, transform_indices = @transform_2, window_bounds = array<i64: 1, 32>}, {pipeline_mode = #tpu.pipeline_mode<synchronous>, transform_indices = @transform_3, window_bounds = array<i64: 1, 32>}, {transform_indices = @transform_4, window_bounds = array<i64: 1, 1, 64, 32>}]} {
    %cst = arith.constant 0.000000e+00 : f32
    %0 = vector.broadcast %cst : f32 to vector<64x32xf32>
    %c0 = arith.constant 0 : index
    %c0_0 = arith.constant 0 : index
    %c0_1 = arith.constant 0 : index
    %c0_2 = arith.constant 0 : index
    %c0_3 = arith.constant 0 : index
    %1 = vector.load %arg2[%c0, %c0_0, %c0_1, %c0_2, %c0_3] : memref<1x1x6x18x32xbf16, #tpu.memory_space<vmem>>, vector<1x1x6x18x32xbf16>
    %2 = vector.shape_cast %1 : vector<1x1x6x18x32xbf16> to vector<6x18x32xbf16>
    %3 = vector.extract_strided_slice %2 {offsets = [0, 0, 0], sizes = [4, 16, 32], strides = [1, 1, 1]} : vector<6x18x32xbf16> to vector<4x16x32xbf16>
    %4 = vector.extract_strided_slice %2 {offsets = [0, 1, 0], sizes = [4, 16, 32], strides = [1, 1, 1]} : vector<6x18x32xbf16> to vector<4x16x32xbf16>
    %5 = vector.extract_strided_slice %2 {offsets = [0, 2, 0], sizes = [4, 16, 32], strides = [1, 1, 1]} : vector<6x18x32xbf16> to vector<4x16x32xbf16>
    %6 = vector.extract_strided_slice %2 {offsets = [1, 0, 0], sizes = [4, 16, 32], strides = [1, 1, 1]} : vector<6x18x32xbf16> to vector<4x16x32xbf16>
    %7 = vector.extract_strided_slice %2 {offsets = [1, 1, 0], sizes = [4, 16, 32], strides = [1, 1, 1]} : vector<6x18x32xbf16> to vector<4x16x32xbf16>
    %8 = vector.extract_strided_slice %2 {offsets = [1, 2, 0], sizes = [4, 16, 32], strides = [1, 1, 1]} : vector<6x18x32xbf16> to vector<4x16x32xbf16>
    %9 = vector.extract_strided_slice %2 {offsets = [2, 0, 0], sizes = [4, 16, 32], strides = [1, 1, 1]} : vector<6x18x32xbf16> to vector<4x16x32xbf16>
    %10 = vector.extract_strided_slice %2 {offsets = [2, 1, 0], sizes = [4, 16, 32], strides = [1, 1, 1]} : vector<6x18x32xbf16> to vector<4x16x32xbf16>
    %11 = vector.extract_strided_slice %2 {offsets = [2, 2, 0], sizes = [4, 16, 32], strides = [1, 1, 1]} : vector<6x18x32xbf16> to vector<4x16x32xbf16>
    %12 = tpu.concatenate %3, %4, %5, %6, %7, %8, %9, %10, %11 in 2 : vector<4x16x32xbf16>, vector<4x16x32xbf16>, vector<4x16x32xbf16>, vector<4x16x32xbf16>, vector<4x16x32xbf16>, vector<4x16x32xbf16>, vector<4x16x32xbf16>, vector<4x16x32xbf16>, vector<4x16x32xbf16> -> vector<4x16x288xbf16>
    %13 = vector.shape_cast %12 : vector<4x16x288xbf16> to vector<64x288xbf16>
    %c0_4 = arith.constant 0 : index
    %c0_5 = arith.constant 0 : index
    %14 = vector.load %arg3[%c0_4, %c0_5] : memref<288x32xbf16, #tpu.memory_space<vmem>>, vector<288x32xbf16>
    %cst_6 = arith.constant dense<0.000000e+00> : vector<64x32xf32>
    %15 = tpu.matmul %13, %14, %cst_6 {dimension_numbers = #tpu.dot_dimension_numbers<[1], [0], [0], [1], [0, 0, 1, 1], [], []>} : vector<64x288xbf16>, vector<288x32xbf16>, vector<64x32xf32> -> vector<64x32xf32>
    %16 = arith.addf %0, %15 : vector<64x32xf32>
    %c0_7 = arith.constant 0 : index
    %c0_8 = arith.constant 0 : index
    %17 = vector.load %arg4[%c0_7, %c0_8] : memref<1x32xf32, #tpu.memory_space<vmem>>, vector<1x32xf32>
    %18 = vector.broadcast %17 : vector<1x32xf32> to vector<64x32xf32>
    %19 = arith.mulf %16, %18 : vector<64x32xf32>
    %c0_9 = arith.constant 0 : index
    %c0_10 = arith.constant 0 : index
    %20 = vector.load %arg5[%c0_9, %c0_10] : memref<1x32xf32, #tpu.memory_space<vmem>>, vector<1x32xf32>
    %21 = vector.broadcast %20 : vector<1x32xf32> to vector<64x32xf32>
    %22 = arith.addf %19, %21 : vector<64x32xf32>
    %cst_11 = arith.constant 0.000000e+00 : f32
    %23 = vector.broadcast %cst_11 : f32 to vector<64x32xf32>
    %24 = arith.cmpf ogt, %22, %23 : vector<64x32xf32>
    %cst_12 = arith.constant 0.00999999977 : f32
    %25 = vector.broadcast %cst_12 : f32 to vector<64x32xf32>
    %26 = arith.mulf %25, %22 : vector<64x32xf32>
    %27 = arith.select %24, %22, %26 : vector<64x32xi1>, vector<64x32xf32>
    %c0_13 = arith.constant 0 : index
    %c0_14 = arith.constant 0 : index
    %c0_15 = arith.constant 0 : index
    %c0_16 = arith.constant 0 : index
    %28 = vector.load %arg6[%c0_13, %c0_14, %c0_15, %c0_16] : memref<1x1x64x32xf32, #tpu.memory_space<vmem>>, vector<1x1x64x32xf32>
    %29 = vector.shape_cast %28 : vector<1x1x64x32xf32> to vector<64x32xf32>
    %30 = vector.shape_cast %27 : vector<64x32xf32> to vector<1x1x64x32xf32>
    tpu.vector_store %arg6[%c0_13, %c0_14, %c0_15, %c0_16], %30 {strides = array<i32>} : memref<1x1x64x32xf32, #tpu.memory_space<vmem>>, vector<1x1x64x32xf32>,
    return
  }
  func.func @transform_0(%arg0: i32, %arg1: i32) -> (i32, i32, i32, i32, i32) {
    %c0_i32 = arith.constant 0 : i32
    %c0_i32_0 = arith.constant 0 : i32
    %c0_i32_1 = arith.constant 0 : i32
    %c0_i32_2 = arith.constant 0 : i32
    return %arg0, %arg1, %c0_i32, %c0_i32_0, %c0_i32_1 : i32, i32, i32, i32, i32
  }
  func.func @transform_1(%arg0: i32, %arg1: i32) -> (i32, i32) {
    %c0_i32 = arith.constant 0 : i32
    %c0_i32_0 = arith.constant 0 : i32
    %c0_i32_1 = arith.constant 0 : i32
    return %c0_i32, %c0_i32_0 : i32, i32
  }
  func.func @transform_2(%arg0: i32, %arg1: i32) -> (i32, i32) {
    %c0_i32 = arith.constant 0 : i32
    %c0_i32_0 = arith.constant 0 : i32
    %c0_i32_1 = arith.constant 0 : i32
    return %c0_i32, %c0_i32_0 : i32, i32
  }
  func.func @transform_3(%arg0: i32, %arg1: i32) -> (i32, i32) {
    %c0_i32 = arith.constant 0 : i32
    %c0_i32_0 = arith.constant 0 : i32
    %c0_i32_1 = arith.constant 0 : i32
    return %c0_i32, %c0_i32_0 : i32, i32
  }
  func.func @transform_4(%arg0: i32, %arg1: i32) -> (i32, i32, i32, i32) {
    %c0_i32 = arith.constant 0 : i32
    %c0_i32_0 = arith.constant 0 : i32
    %c0_i32_1 = arith.constant 0 : i32
    return %arg0, %arg1, %c0_i32, %c0_i32_0 : i32, i32, i32, i32
  }
}

module attributes {stable_mosaic.version = 11 : i64} {
  func.func @kernel(%arg0: i32, %arg1: i32, %arg2: memref<1x1x6x18x32xbf16, #tpu.memory_space<vmem>>, %arg3: memref<1x1x6x18x16xbf16, #tpu.memory_space<vmem>>, %arg4: memref<288x32xbf16, #tpu.memory_space<vmem>>, %arg5: memref<144x32xbf16, #tpu.memory_space<vmem>>, %arg6: memref<1x32xf32, #tpu.memory_space<vmem>>, %arg7: memref<1x32xf32, #tpu.memory_space<vmem>>, %arg8: memref<1x1x64x32xbf16, #tpu.memory_space<vmem>>) attributes {dimension_semantics = [#tpu.dimension_semantics<parallel>, #tpu.dimension_semantics<parallel>], iteration_bounds = array<i64: 2, 4>, scalar_prefetch = 0 : i64, scratch_operands = 0 : i64, tpu.core_type = #tpu.core_type<tc>, window_params = [{transform_indices = @transform_0, window_bounds = array<i64: 1, 1, 6, 18, 32>}, {transform_indices = @transform_1, window_bounds = array<i64: 1, 1, 6, 18, 16>}, {pipeline_mode = #tpu.pipeline_mode<synchronous>, transform_indices = @transform_2, window_bounds = array<i64: 288, 32>}, {pipeline_mode = #tpu.pipeline_mode<synchronous>, transform_indices = @transform_3, window_bounds = array<i64: 144, 32>}, {pipeline_mode = #tpu.pipeline_mode<synchronous>, transform_indices = @transform_4, window_bounds = array<i64: 1, 32>}, {pipeline_mode = #tpu.pipeline_mode<synchronous>, transform_indices = @transform_5, window_bounds = array<i64: 1, 32>}, {transform_indices = @transform_6, window_bounds = array<i64: 1, 1, 64, 32>}]} {
    %cst = arith.constant 0.000000e+00 : f32
    %0 = vector.broadcast %cst : f32 to vector<64x32xf32>
    %c0 = arith.constant 0 : index
    %c0_0 = arith.constant 0 : index
    %c0_1 = arith.constant 0 : index
    %c0_2 = arith.constant 0 : index
    %c0_3 = arith.constant 0 : index
    %1 = vector.load %arg2[%c0, %c0_0, %c0_1, %c0_2, %c0_3] : memref<1x1x6x18x32xbf16, #tpu.memory_space<vmem>>, vector<1x1x6x18x32xbf16>
    %2 = vector.shape_cast %1 : vector<1x1x6x18x32xbf16> to vector<6x18x32xbf16>
    %3 = vector.extract_strided_slice %2 {offsets = [0, 0, 0], sizes = [4, 16, 32], strides = [1, 1, 1]} : vector<6x18x32xbf16> to vector<4x16x32xbf16>
    %4 = vector.extract_strided_slice %2 {offsets = [0, 1, 0], sizes = [4, 16, 32], strides = [1, 1, 1]} : vector<6x18x32xbf16> to vector<4x16x32xbf16>
    %5 = vector.extract_strided_slice %2 {offsets = [0, 2, 0], sizes = [4, 16, 32], strides = [1, 1, 1]} : vector<6x18x32xbf16> to vector<4x16x32xbf16>
    %6 = vector.extract_strided_slice %2 {offsets = [1, 0, 0], sizes = [4, 16, 32], strides = [1, 1, 1]} : vector<6x18x32xbf16> to vector<4x16x32xbf16>
    %7 = vector.extract_strided_slice %2 {offsets = [1, 1, 0], sizes = [4, 16, 32], strides = [1, 1, 1]} : vector<6x18x32xbf16> to vector<4x16x32xbf16>
    %8 = vector.extract_strided_slice %2 {offsets = [1, 2, 0], sizes = [4, 16, 32], strides = [1, 1, 1]} : vector<6x18x32xbf16> to vector<4x16x32xbf16>
    %9 = vector.extract_strided_slice %2 {offsets = [2, 0, 0], sizes = [4, 16, 32], strides = [1, 1, 1]} : vector<6x18x32xbf16> to vector<4x16x32xbf16>
    %10 = vector.extract_strided_slice %2 {offsets = [2, 1, 0], sizes = [4, 16, 32], strides = [1, 1, 1]} : vector<6x18x32xbf16> to vector<4x16x32xbf16>
    %11 = vector.extract_strided_slice %2 {offsets = [2, 2, 0], sizes = [4, 16, 32], strides = [1, 1, 1]} : vector<6x18x32xbf16> to vector<4x16x32xbf16>
    %12 = tpu.concatenate %3, %4, %5, %6, %7, %8, %9, %10, %11 in 2 : vector<4x16x32xbf16>, vector<4x16x32xbf16>, vector<4x16x32xbf16>, vector<4x16x32xbf16>, vector<4x16x32xbf16>, vector<4x16x32xbf16>, vector<4x16x32xbf16>, vector<4x16x32xbf16>, vector<4x16x32xbf16> -> vector<4x16x288xbf16>
    %13 = vector.shape_cast %12 : vector<4x16x288xbf16> to vector<64x288xbf16>
    %c0_4 = arith.constant 0 : index
    %c0_5 = arith.constant 0 : index
    %14 = vector.load %arg4[%c0_4, %c0_5] : memref<288x32xbf16, #tpu.memory_space<vmem>>, vector<288x32xbf16>
    %cst_6 = arith.constant dense<0.000000e+00> : vector<64x32xf32>
    %15 = tpu.matmul %13, %14, %cst_6 {dimension_numbers = #tpu.dot_dimension_numbers<[1], [0], [0], [1], [0, 0, 1, 1], [], []>} : vector<64x288xbf16>, vector<288x32xbf16>, vector<64x32xf32> -> vector<64x32xf32>
    %16 = arith.addf %0, %15 : vector<64x32xf32>
    %c0_7 = arith.constant 0 : index
    %c0_8 = arith.constant 0 : index
    %c0_9 = arith.constant 0 : index
    %c0_10 = arith.constant 0 : index
    %c0_11 = arith.constant 0 : index
    %17 = vector.load %arg3[%c0_7, %c0_8, %c0_9, %c0_10, %c0_11] : memref<1x1x6x18x16xbf16, #tpu.memory_space<vmem>>, vector<1x1x6x18x16xbf16>
    %18 = vector.shape_cast %17 : vector<1x1x6x18x16xbf16> to vector<6x18x16xbf16>
    %19 = vector.extract_strided_slice %18 {offsets = [0, 0, 0], sizes = [4, 16, 16], strides = [1, 1, 1]} : vector<6x18x16xbf16> to vector<4x16x16xbf16>
    %20 = vector.extract_strided_slice %18 {offsets = [0, 1, 0], sizes = [4, 16, 16], strides = [1, 1, 1]} : vector<6x18x16xbf16> to vector<4x16x16xbf16>
    %21 = vector.extract_strided_slice %18 {offsets = [0, 2, 0], sizes = [4, 16, 16], strides = [1, 1, 1]} : vector<6x18x16xbf16> to vector<4x16x16xbf16>
    %22 = vector.extract_strided_slice %18 {offsets = [1, 0, 0], sizes = [4, 16, 16], strides = [1, 1, 1]} : vector<6x18x16xbf16> to vector<4x16x16xbf16>
    %23 = vector.extract_strided_slice %18 {offsets = [1, 1, 0], sizes = [4, 16, 16], strides = [1, 1, 1]} : vector<6x18x16xbf16> to vector<4x16x16xbf16>
    %24 = vector.extract_strided_slice %18 {offsets = [1, 2, 0], sizes = [4, 16, 16], strides = [1, 1, 1]} : vector<6x18x16xbf16> to vector<4x16x16xbf16>
    %25 = vector.extract_strided_slice %18 {offsets = [2, 0, 0], sizes = [4, 16, 16], strides = [1, 1, 1]} : vector<6x18x16xbf16> to vector<4x16x16xbf16>
    %26 = vector.extract_strided_slice %18 {offsets = [2, 1, 0], sizes = [4, 16, 16], strides = [1, 1, 1]} : vector<6x18x16xbf16> to vector<4x16x16xbf16>
    %27 = vector.extract_strided_slice %18 {offsets = [2, 2, 0], sizes = [4, 16, 16], strides = [1, 1, 1]} : vector<6x18x16xbf16> to vector<4x16x16xbf16>
    %28 = tpu.concatenate %19, %20, %21, %22, %23, %24, %25, %26, %27 in 2 : vector<4x16x16xbf16>, vector<4x16x16xbf16>, vector<4x16x16xbf16>, vector<4x16x16xbf16>, vector<4x16x16xbf16>, vector<4x16x16xbf16>, vector<4x16x16xbf16>, vector<4x16x16xbf16>, vector<4x16x16xbf16> -> vector<4x16x144xbf16>
    %29 = vector.shape_cast %28 : vector<4x16x144xbf16> to vector<64x144xbf16>
    %c0_12 = arith.constant 0 : index
    %c0_13 = arith.constant 0 : index
    %30 = vector.load %arg5[%c0_12, %c0_13] : memref<144x32xbf16, #tpu.memory_space<vmem>>, vector<144x32xbf16>
    %cst_14 = arith.constant dense<0.000000e+00> : vector<64x32xf32>
    %31 = tpu.matmul %29, %30, %cst_14 {dimension_numbers = #tpu.dot_dimension_numbers<[1], [0], [0], [1], [0, 0, 1, 1], [], []>} : vector<64x144xbf16>, vector<144x32xbf16>, vector<64x32xf32> -> vector<64x32xf32>
    %32 = arith.addf %16, %31 : vector<64x32xf32>
    %c0_15 = arith.constant 0 : index
    %c0_16 = arith.constant 0 : index
    %33 = vector.load %arg6[%c0_15, %c0_16] : memref<1x32xf32, #tpu.memory_space<vmem>>, vector<1x32xf32>
    %34 = vector.broadcast %33 : vector<1x32xf32> to vector<64x32xf32>
    %35 = arith.mulf %32, %34 : vector<64x32xf32>
    %c0_17 = arith.constant 0 : index
    %c0_18 = arith.constant 0 : index
    %36 = vector.load %arg7[%c0_17, %c0_18] : memref<1x32xf32, #tpu.memory_space<vmem>>, vector<1x32xf32>
    %37 = vector.broadcast %36 : vector<1x32xf32> to vector<64x32xf32>
    %38 = arith.addf %35, %37 : vector<64x32xf32>
    %cst_19 = arith.constant 0.000000e+00 : f32
    %39 = vector.broadcast %cst_19 : f32 to vector<64x32xf32>
    %40 = arith.cmpf ogt, %38, %39 : vector<64x32xf32>
    %cst_20 = arith.constant 0.00999999977 : f32
    %41 = vector.broadcast %cst_20 : f32 to vector<64x32xf32>
    %42 = arith.mulf %41, %38 : vector<64x32xf32>
    %43 = arith.select %40, %38, %42 : vector<64x32xi1>, vector<64x32xf32>
    %44 = arith.truncf %43 : vector<64x32xf32> to vector<64x32xbf16>
    %c0_21 = arith.constant 0 : index
    %c0_22 = arith.constant 0 : index
    %c0_23 = arith.constant 0 : index
    %c0_24 = arith.constant 0 : index
    %45 = vector.load %arg8[%c0_21, %c0_22, %c0_23, %c0_24] : memref<1x1x64x32xbf16, #tpu.memory_space<vmem>>, vector<1x1x64x32xbf16>
    %46 = vector.shape_cast %45 : vector<1x1x64x32xbf16> to vector<64x32xbf16>
    %47 = vector.shape_cast %44 : vector<64x32xbf16> to vector<1x1x64x32xbf16>
    tpu.vector_store %arg8[%c0_21, %c0_22, %c0_23, %c0_24], %47 {strides = array<i32>} : memref<1x1x64x32xbf16, #tpu.memory_space<vmem>>, vector<1x1x64x32xbf16>,
    return
  }
  func.func @transform_0(%arg0: i32, %arg1: i32) -> (i32, i32, i32, i32, i32) {
    %c0_i32 = arith.constant 0 : i32
    %c0_i32_0 = arith.constant 0 : i32
    %c0_i32_1 = arith.constant 0 : i32
    %c0_i32_2 = arith.constant 0 : i32
    return %arg0, %arg1, %c0_i32, %c0_i32_0, %c0_i32_1 : i32, i32, i32, i32, i32
  }
  func.func @transform_1(%arg0: i32, %arg1: i32) -> (i32, i32, i32, i32, i32) {
    %c0_i32 = arith.constant 0 : i32
    %c0_i32_0 = arith.constant 0 : i32
    %c0_i32_1 = arith.constant 0 : i32
    %c0_i32_2 = arith.constant 0 : i32
    return %arg0, %arg1, %c0_i32, %c0_i32_0, %c0_i32_1 : i32, i32, i32, i32, i32
  }
  func.func @transform_2(%arg0: i32, %arg1: i32) -> (i32, i32) {
    %c0_i32 = arith.constant 0 : i32
    %c0_i32_0 = arith.constant 0 : i32
    %c0_i32_1 = arith.constant 0 : i32
    return %c0_i32, %c0_i32_0 : i32, i32
  }
  func.func @transform_3(%arg0: i32, %arg1: i32) -> (i32, i32) {
    %c0_i32 = arith.constant 0 : i32
    %c0_i32_0 = arith.constant 0 : i32
    %c0_i32_1 = arith.constant 0 : i32
    return %c0_i32, %c0_i32_0 : i32, i32
  }
  func.func @transform_4(%arg0: i32, %arg1: i32) -> (i32, i32) {
    %c0_i32 = arith.constant 0 : i32
    %c0_i32_0 = arith.constant 0 : i32
    %c0_i32_1 = arith.constant 0 : i32
    return %c0_i32, %c0_i32_0 : i32, i32
  }
  func.func @transform_5(%arg0: i32, %arg1: i32) -> (i32, i32) {
    %c0_i32 = arith.constant 0 : i32
    %c0_i32_0 = arith.constant 0 : i32
    %c0_i32_1 = arith.constant 0 : i32
    return %c0_i32, %c0_i32_0 : i32, i32
  }
  func.func @transform_6(%arg0: i32, %arg1: i32) -> (i32, i32, i32, i32) {
    %c0_i32 = arith.constant 0 : i32
    %c0_i32_0 = arith.constant 0 : i32
    %c0_i32_1 = arith.constant 0 : i32
    return %arg0, %arg1, %c0_i32, %c0_i32_0 : i32, i32, i32, i32
  }
}

</mosaic_0001>

<llo_original>
// kernel: tile.8
$region0: #{tile.8}
  #allocation0 [shape = 's32[1]{0}', space=sflag, size = 0x4, scoped, tag = 'scoped memory for tile.8']
  %s0 = inlined_call_operand.vmem [shape: f32[32], index: 0, kind: input, shape index: {}]
  %s1 = inlined_call_operand.vmem [shape: f32[4,32], index: 1, kind: output, shape index: {}]
  // Predicated region
  $region2: #{tile.8} parent=0 // pred_check
    _
  $region3: #{tile.8} parent=0 // pred_check_branch
    %3 = sbr.rel (0) target = $region5
  $region4: #{tile.8} parent=0 // pred_region
    _
  $region5: #{tile.8} parent=0 // pred_fallthru
    _
  %v4 = vld [vmem:[%s0] ss:$0 sm:$0xff]
  %5 = vst [vmem:[%s1] sm:$0xf] %v4

// kernel: tile.9
$region0: #{tile.9}
  %s0 = inlined_call_operand.vmem [shape: f32[4,32], index: 0, kind: input, shape index: {}]
  %s1 = inlined_call_operand.vmem [shape: f32[1,128], index: 1, kind: output, shape index: {}]
  $region1: #{tile.9} parent=0
    #allocation0 [shape = 'u8[4096]{0}', space=vmem, size = 0x1000, scoped, tag = 'scoped mem for output reshape']
    #allocation1 [shape = 'u8[4096]{0}', space=vmem, size = 0x1000, scoped, tag = 'scoped mem for input reshape']
    %s3 = sshll.u32 1, 4
    %s4 = ssub.s32 %s3, 1
    %v5 = vld [vmem:[%s0] sm:%s4]
    %6 = vst [vmem:[#allocation1] sm:%s4] %v5
    %v7 = vld [vmem:[#allocation1] sm:$0x1]
    %vm8 = vcmask 261120
    %9 = vst.msk [vmem:[#allocation0] sm:$0x1] %vm8, %v7
    %s10 = scalar_lea.vmem [#allocation1], 3
    %v11 = vld [vmem:[%s10] sm:$0x1]
    %12 = vrot.lane.b32.xlu0 %v11, 96
    %v13 = vpop.permute.xlu0 %12
    %vm14 = vcmask 1048320
    %15 = vst.msk [vmem:[#allocation0] sm:$0x1] %vm14, %v13
    %s16 = scalar_lea.vmem [#allocation1], 2
    %v17 = vld [vmem:[%s16] sm:$0x1]
    %18 = vrot.lane.b32.xlu0 %v17, 64
    %v19 = vpop.permute.xlu0 %18
    %vm20 = vcmask 785920
    %21 = vst.msk [vmem:[#allocation0] sm:$0x1] %vm20, %v19
    %s22 = scalar_lea.vmem [#allocation1], 1
    %v23 = vld [vmem:[%s22] sm:$0x1]
    %24 = vrot.lane.b32.xlu0 %v23, 32
    %v25 = vpop.permute.xlu0 %24
    %vm26 = vcmask 523520
    %27 = vst.msk [vmem:[#allocation0] sm:$0x1] %vm26, %v25
    %s29 = sshll.u32 1, 1
    %s30 = ssub.s32 %s29, 1
    %v32 = vld [vmem:[#allocation0] sm:%s30]
    %s33 = sshll.u32 1, 1
    %s34 = ssub.s32 %s33, 1
    %35 = vst [vmem:[%s1] sm:%s34] %v32

// kernel: upsample_bn_forward.3
$region0: #{upsample_bn_forward.3}
  #allocation0 [shape = 'u32[]', space=smem, size = 0x4, offset = 0x4, fixed_abs, tag = 'smem constant byte address 0x4 - core index']
  #allocation1 [shape = 'u32[144,128]{1,0:T(1,128)}', space=vmem, size = 0x12000, scoped, tag = 'internal scratch']
  %s0 = inlined_call_operand.vmem [shape: bf16[2,64,32], index: 0, kind: input, shape index: {}]
  %s1 = inlined_call_operand.vmem [shape: bf16[32,128], index: 1, kind: input, shape index: {}]
  %s2 = inlined_call_operand.vmem [shape: f32[1,128], index: 2, kind: input, shape index: {}]
  %s3 = inlined_call_operand.vmem [shape: bf16[2,64,128], index: 3, kind: output, shape index: {}]
  %s4 = sld [smem:[#allocation0]]
  $region45: #{upsample_bn_forward.3} parent=0
    _
  %s6 = ssub.s32 1, %s4
  %s7 = scalar_select 0, %s6, %s4
  loop: start=0, step=1, limit=4
  $region2: #{upsample_bn_forward.3} parent=0 // loop_pre_header
    _
  $region3: #{upsample_bn_forward.3} parent=0 // loop_header
    %s9 = sphi 0, %s13
    %p10 = scmp.ge.s32.totalorder %s9, 4
    %s16 = sphi 0, %s28
    %s17 = sphi 0, %s24
    %s18 = sphi 0, %s16
    %s19 = sphi 0, %s17
    %s20 = sphi 0, %s18
    %s21 = sphi 0, %s19
    %s33 = sphi 0, %s35
    %s36 = sphi 0, %s33
    %s37 = sphi 0, %s36
    %s53 = sphi 0, %s37
    %s57 = sphi 0, %s57
    %s59 = sphi 0, %s57
    %s60 = sphi 0, %s59
    %s74 = sphi 0, %s60
    %s78 = sphi 0, %s78
    %s80 = sphi 0, %s78
    %s81 = sphi 0, %s80
    %s95 = sphi 0, %s81
    %s103 = sphi 0, %s105
    %s106 = sphi 0, %s103
    %s107 = sphi 0, %s106
    %s123 = sphi 0, %s107
  $region4: #{upsample_bn_forward.3} parent=0 // loop_header_branch
    %12 = sbr.rel (%p10) target = $region8
  $region5: #{upsample_bn_forward.3} parent=0 // loop_body
    %s14 = ssub.s32 %s9, 1
    %s15 = ssub.s32 %s9, 2
    %s22 = sadd.s32 1, %s17
    %p23 = scmp.ge.s32.totalorder %s22, 1
    %s24 = scalar_select %p23, 0, %s22
    %s25 = sadd.s32 1, %s16
    %s26 = scalar_select %p23, %s25, %s16
    %p27 = scmp.ge.s32.totalorder %s26, 2
    %s28 = scalar_select %p27, 0, %s26
    %s29 = ssub.s32 %s16, %s28
    %s30 = ssub.s32 %s17, %s24
    %s31 = sor.u32 %s29, %s30
    %p32 = scmp.eq.s32.totalorder %s31, 0
    %s34 = sadd.s32 %s33, 1
    %s35 = scalar_select %p32, %s33, %s34
    %p38 = pneg %p32
    %p39 = scmp.eq.s32.totalorder %s9, 1
    %p40 = por %p38, %p39
    %p41 = scmp.ne.s32.totalorder %s33, %s36
    %p42 = scmp.eq.s32.totalorder %s9, 0
    %p43 = por %p41, %p42
    %p44 = scmp.ne.s32.totalorder %s33, %s36
    %p45 = scmp.eq.s32.totalorder %s14, 1
    %p46 = por %p44, %p45
    %p47 = scmp.ne.s32.totalorder %s36, %s37
    %p48 = scmp.eq.s32.totalorder %s14, 0
    %p49 = por %p47, %p48
    %p50 = scmp.ne.s32.totalorder %s36, %s37
    %p51 = scmp.eq.s32.totalorder %s15, 1
    %p52 = por %p50, %p51
    %p54 = scmp.ne.s32.totalorder %s37, %s53
    %p55 = scmp.eq.s32.totalorder %s15, 0
    %p56 = por %p54, %p55
    %s58 = sadd.s32 %s57, 1
    %p61 = scmp.eq.s32.totalorder %s9, 1
    %p62 = scmp.ne.s32.totalorder %s57, %s59
    %p63 = scmp.eq.s32.totalorder %s9, 0
    %p64 = por %p62, %p63
    %p65 = scmp.ne.s32.totalorder %s57, %s59
    %p66 = scmp.eq.s32.totalorder %s14, 1
    %p67 = por %p65, %p66
    %p68 = scmp.ne.s32.totalorder %s59, %s60
    %p69 = scmp.eq.s32.totalorder %s14, 0
    %p70 = por %p68, %p69
    %p71 = scmp.ne.s32.totalorder %s59, %s60
    %p72 = scmp.eq.s32.totalorder %s15, 1
    %p73 = por %p71, %p72
    %p75 = scmp.ne.s32.totalorder %s60, %s74
    %p76 = scmp.eq.s32.totalorder %s15, 0
    %p77 = por %p75, %p76
    %s79 = sadd.s32 %s78, 1
    %p82 = scmp.eq.s32.totalorder %s9, 1
    %p83 = scmp.ne.s32.totalorder %s78, %s80
    %p84 = scmp.eq.s32.totalorder %s9, 0
    %p85 = por %p83, %p84
    %p86 = scmp.ne.s32.totalorder %s78, %s80
    %p87 = scmp.eq.s32.totalorder %s14, 1
    %p88 = por %p86, %p87
    %p89 = scmp.ne.s32.totalorder %s80, %s81
    %p90 = scmp.eq.s32.totalorder %s14, 0
    %p91 = por %p89, %p90
    %p92 = scmp.ne.s32.totalorder %s80, %s81
    %p93 = scmp.eq.s32.totalorder %s15, 1
    %p94 = por %p92, %p93
    %p96 = scmp.ne.s32.totalorder %s81, %s95
    %p97 = scmp.eq.s32.totalorder %s15, 0
    %p98 = por %p96, %p97
    %s99 = ssub.s32 %s16, %s28
    %s100 = ssub.s32 %s17, %s24
    %s101 = sor.u32 %s99, %s100
    %p102 = scmp.eq.s32.totalorder %s101, 0
    %s104 = sadd.s32 %s103, 1
    %s105 = scalar_select %p102, %s103, %s104
    %p108 = pneg %p102
    %p109 = scmp.eq.s32.totalorder %s9, 1
    %p110 = por %p108, %p109
    %p111 = scmp.ne.s32.totalorder %s103, %s106
    %p112 = scmp.eq.s32.totalorder %s9, 0
    %p113 = por %p111, %p112
    %p114 = scmp.ne.s32.totalorder %s103, %s106
    %p115 = scmp.eq.s32.totalorder %s14, 1
    %p116 = por %p114, %p115
    %p117 = scmp.ne.s32.totalorder %s106, %s107
    %p118 = scmp.eq.s32.totalorder %s14, 0
    %p119 = por %p117, %p118
    %p120 = scmp.ne.s32.totalorder %s106, %s107
    %p121 = scmp.eq.s32.totalorder %s15, 1
    %p122 = por %p120, %p121
    %p124 = scmp.ne.s32.totalorder %s107, %s123
    %p125 = scmp.eq.s32.totalorder %s15, 0
    %p126 = por %p124, %p125
    %p127 = scmp.le.s32.totalorder 1, %s9
    %p128 = scmp.lt.s32.totalorder %s9, 3
    %p129 = pnand %p127, %p128
    %p130 = pneg %p129
    // Predicated region
    $region9: #{upsample_bn_forward.3} parent=5 // pred_check
      _
    $region10: #{upsample_bn_forward.3} parent=5 // pred_check_branch
      %132 = sbr.rel (%p129) target = $region12
    $region11: #{upsample_bn_forward.3} parent=5 // pred_region
      %s133 = ssub.s32 %s9, 1
      // Predicated region
      $region13: #{upsample_bn_forward.3} parent=11 // pred_check
        %p134 = pneg %p70
      $region14: #{upsample_bn_forward.3} parent=11 // pred_check_branch
        %136 = sbr.rel (%p134) target = $region16
      $region15: #{upsample_bn_forward.3} parent=11 // pred_region
        _
      $region16: #{upsample_bn_forward.3} parent=11 // pred_fallthru
        _
      // Predicated region
      $region17: #{upsample_bn_forward.3} parent=11 // pred_check
        %p137 = pneg %p91
      $region18: #{upsample_bn_forward.3} parent=11 // pred_check_branch
        %139 = sbr.rel (%p137) target = $region20
      $region19: #{upsample_bn_forward.3} parent=11 // pred_region
        _
      $region20: #{upsample_bn_forward.3} parent=11 // pred_fallthru
        _
    $region12: #{upsample_bn_forward.3} parent=5 // pred_fallthru
      _
    %p140 = scmp.lt.s32.totalorder %s9, 2
    // Predicated region
    $region21: #{upsample_bn_forward.3} parent=5 // pred_check
      %p141 = pneg %p140
    $region22: #{upsample_bn_forward.3} parent=5 // pred_check_branch
      %143 = sbr.rel (%p141) target = $region24
    $region23: #{upsample_bn_forward.3} parent=5 // pred_region
      // Predicated region
      $region25: #{upsample_bn_forward.3} parent=23 // pred_check
        %p144 = pneg %p43
      $region26: #{upsample_bn_forward.3} parent=23 // pred_check_branch
        %146 = sbr.rel (%p144) target = $region28
      $region27: #{upsample_bn_forward.3} parent=23 // pred_region
        %s147 = smul.u32 8, %s17
        %p148 = scmp.lt.s32.totalorder %s16, 1
        %s149 = scalar_select %p148, %s16, 1
        %p150 = scmp.lt.s32.totalorder %s147, 7
        %s151 = scalar_select %p150, %s147, 7
        %s152 = smul.addr %s149, 8
        %s153 = sadd.s32 %s151, %s152
        %s154 = smul.addr %s153, 4
        %s155 = scalar_lea.vmem %s0, %s154
        %s156 = smul.u32 8, %s17
      $region28: #{upsample_bn_forward.3} parent=23 // pred_fallthru
        _
    $region24: #{upsample_bn_forward.3} parent=5 // pred_fallthru
      _
    %p157 = scmp.le.s32.totalorder 1, %s9
    %p158 = scmp.lt.s32.totalorder %s9, 3
    %p159 = pnand %p157, %p158
    %p160 = pneg %p159
    // Predicated region
    $region29: #{upsample_bn_forward.3} parent=5 // pred_check
      _
    $region30: #{upsample_bn_forward.3} parent=5 // pred_check_branch
      %162 = sbr.rel (%p159) target = $region32
    $region31: #{upsample_bn_forward.3} parent=5 // pred_region
      %s163 = ssub.s32 %s9, 1
      %s164 = smul.u32 8, %s19
      %p165 = scmp.lt.s32.totalorder %s18, 1
      %s166 = scalar_select %p165, %s18, 1
      %p167 = scmp.lt.s32.totalorder %s164, 7
      %s168 = scalar_select %p167, %s164, 7
      %s169 = smul.addr %s166, 8
      %s170 = sadd.s32 %s168, %s169
      %s171 = smul.addr %s170, 4
      %s172 = scalar_lea.vmem %s0, %s171
      %p173 = pneg %p49
      %p174 = pneg %p46
      %p175 = pneg %p70
      %p176 = pneg %p67
      %p177 = pneg %p91
      %p178 = pneg %p88
      %p179 = pneg %p119
      %p180 = pneg %p116
      %s181 = smul.u32 8, %s19
      %p182 = scmp.lt.s32.totalorder %s18, 1
      %s183 = scalar_select %p182, %s18, 1
      %p184 = scmp.lt.s32.totalorder %s181, 7
      %s185 = scalar_select %p184, %s181, 7
      %s186 = smul.addr %s183, 8
      %s187 = sadd.s32 %s185, %s186
      %s188 = smul.addr %s187, 4
      %s189 = scalar_lea.vmem %s3, %s188
      %s190 = smul.u32 8, %s19
      %p191 = scmp.lt.s32.totalorder %s18, 1
      %s192 = scalar_select %p191, %s18, 1
      %p193 = scmp.lt.s32.totalorder %s190, 7
      %s194 = scalar_select %p193, %s190, 7
      %s195 = smul.addr %s192, 8
      %s196 = sadd.s32 %s194, %s195
      %s197 = smul.addr %s196, 4
      %s198 = scalar_lea.vmem %s0, %s197
      %s199 = smul.u32 8, %s19
      %s200 = smul.u32 8, %s19
      %p201 = scmp.lt.s32.totalorder %s18, 1
      %s202 = scalar_select %p201, %s18, 1
      %p203 = scmp.lt.s32.totalorder %s200, 7
      %s204 = scalar_select %p203, %s200, 7
      %s205 = smul.addr %s202, 8
      %s206 = sadd.s32 %s204, %s205
      %s207 = smul.addr %s206, 4
      %s208 = scalar_lea.vmem %s3, %s207
      %s209 = smul.u32 8, %s19
      %v211 = vld [vmem:[%s198] sm:$0xf]
      %v212 = vld [vmem:[%s198 + $0x4] sm:$0xf]
      %v213 = vld [vmem:[%s198 + $0x8] sm:$0xf]
      %v214 = vld [vmem:[%s198 + $0xc] sm:$0xf]
      %v215 = vld [vmem:[%s198 + $0x10] sm:$0xf]
      %v216 = vld [vmem:[%s198 + $0x14] sm:$0xf]
      %v217 = vld [vmem:[%s198 + $0x18] sm:$0xf]
      %v218 = vld [vmem:[%s198 + $0x1c] sm:$0xf]
      %v219 = vld [vmem:[%s1] sm:$0xf]
      %v220 = vld [vmem:[%s1 + $0x4] sm:$0xf]
      %v221 = vld [vmem:[%s1 + $0x8] sm:$0xf]
      %v222 = vld [vmem:[%s1 + $0xc] sm:$0xf]
      %v223 = vld [vmem:[%s2] sm:$0x1]
      %v225 = vlaneseq
      %v226 = vshrl.u32 %v225, 7
      %v227 = vsub.s32 0, %v226
      %v228 = vrot.slane %v223, %v227
      %v238 = vunpack.c.l.b16 %v211
      %v239 = vunpack.c.l.b16 %v212
      %v240 = vunpack.c.l.b16 %v213
      %v241 = vunpack.c.l.b16 %v214
      %v242 = vunpack.c.l.b16 %v215
      %v243 = vunpack.c.l.b16 %v216
      %v244 = vunpack.c.l.b16 %v217
      %v245 = vunpack.c.l.b16 %v218
      %v246 = vpack.c.b16 %v239, %v238
      %v247 = vpack.c.b16 %v241, %v240
      %v248 = vpack.c.b16 %v243, %v242
      %v249 = vpack.c.b16 %v245, %v244
      %v254 = vunpack.c.l.b16 %v219
      %v255 = vunpack.c.l.b16 %v220
      %v256 = vunpack.c.l.b16 %v221
      %v257 = vunpack.c.l.b16 %v222
      %v258 = vpack.c.b16 %v255, %v254
      %v259 = vpack.c.b16 %v257, %v256
      %vm262 = vcmask 261120
      %v264 = vsel %vm262, %v246, 0
      %v267 = vsel %vm262, %v247, 0
      %v270 = vsel %vm262, %v248, 0
      %v273 = vsel %vm262, %v249, 0
      %275 = vmatprep.subr.bf16.mxu0 0
      %276 = vmatpush1.bf16.msra.mxu0 0
      %277 = vmatprep.subr.bf16.mxu0 0
      %278 = vmatpush1.bf16.msra.mxu0 0
      %279 = vmatprep.subr.bf16.mxu0 0
      %280 = vmatpush1.bf16.msra.mxu0 0
      %281 = vmatprep.subr.bf16.mxu0 0
      %282 = vmatpush1.bf16.msra.mxu0 0
      %283 = vmatprep.subr.bf16.mxu0 0
      %284 = vmatpush1.bf16.msra.mxu0 0
      %285 = vmatprep.subr.bf16.mxu0 0
      %286 = vmatpush1.bf16.msra.mxu0 0
      %287 = vmatprep.subr.bf16.mxu0 0
      %288 = vmatpush1.bf16.msra.mxu0 %v259
      %289 = vmatprep.subr.bf16.mxu0 0
      %290 = vmatpush1.bf16.msra.mxu0 %v258
      %291 = vmatprep.subr.bf16.mxu0 0
      %292 = vmatpush2.bf16.msra.mxu0 0
      %293 = vmatprep.subr.bf16.mxu0 0
      %294 = vmatpush2.bf16.msra.mxu0 0
      %295 = vmatprep.subr.bf16.mxu0 0
      %296 = vmatpush2.bf16.msra.mxu0 0
      %297 = vmatprep.subr.bf16.mxu0 0
      %298 = vmatpush2.bf16.msra.mxu0 0
      %299 = vmatprep.subr.bf16.mxu0 0
      %300 = vmatpush2.bf16.msra.mxu0 0
      %301 = vmatprep.subr.bf16.mxu0 0
      %302 = vmatpush2.bf16.msra.mxu0 0
      %303 = vmatprep.subr.bf16.mxu0 0
      %304 = vmatpush2.bf16.msra.mxu0 0
      %305 = vmatprep.subr.bf16.mxu0 0
      %306 = vmatpush2.bf16.msra.mxu0 0
      %307 = vmatprep.mubr.bf16.mxu0 0
      %308 = vmatmul.mubr.bf16.gmra.mxu0 %v264
      %v309 = vpop.f32.mrf.mxu0
      %v310 = vadd.f32 %v228, %v309
      %v311 = vpop.f32.mrf.mxu0
      %v312 = vpop.f32.mrf.mxu0
      %v313 = vadd.f32 %v228, %v312
      %v314 = vpop.f32.mrf.mxu0
      %315 = vmatprep.mubr.bf16.mxu0 0
      %316 = vmatmul.mubr.bf16.gmra.mxu0 %v267
      %v317 = vpop.f32.mrf.mxu0
      %v318 = vadd.f32 %v228, %v317
      %v319 = vpop.f32.mrf.mxu0
      %v320 = vpop.f32.mrf.mxu0
      %v321 = vadd.f32 %v228, %v320
      %v322 = vpop.f32.mrf.mxu0
      %323 = vmatprep.mubr.bf16.mxu0 0
      %324 = vmatmul.mubr.bf16.gmra.mxu0 %v270
      %v325 = vpop.f32.mrf.mxu0
      %v326 = vadd.f32 %v228, %v325
      %v327 = vpop.f32.mrf.mxu0
      %v328 = vpop.f32.mrf.mxu0
      %v329 = vadd.f32 %v228, %v328
      %v330 = vpop.f32.mrf.mxu0
      %331 = vmatprep.mubr.bf16.mxu0 0
      %332 = vmatmul.mubr.bf16.gmra.mxu0 %v273
      %v333 = vpop.f32.mrf.mxu0
      %v334 = vadd.f32 %v228, %v333
      %v335 = vpop.f32.mrf.mxu0
      %v336 = vpop.f32.mrf.mxu0
      %v337 = vadd.f32 %v228, %v336
      %v338 = vpop.f32.mrf.mxu0
      %339 = vdwg.mxu0
      %v340 = vpack.c.bf16 %v313, %v310
      %v341 = vpack.c.bf16 %v321, %v318
      %v342 = vpack.c.bf16 %v329, %v326
      %v343 = vpack.c.bf16 %v337, %v334
      %v348 = vunpack.c.l.b16 %v340
      %v349 = vunpack.c.h.b16 %v340
      %v350 = vunpack.c.l.b16 %v341
      %v351 = vunpack.c.h.b16 %v341
      %v352 = vunpack.c.l.b16 %v342
      %v353 = vunpack.c.h.b16 %v342
      %v354 = vunpack.c.l.b16 %v343
      %v355 = vunpack.c.h.b16 %v343
      %v356 = vpack.c.b16 %v348, %v348
      %v357 = vpack.c.b16 %v349, %v349
      %v358 = vpack.c.b16 %v350, %v350
      %v359 = vpack.c.b16 %v351, %v351
      %v360 = vpack.c.b16 %v352, %v352
      %v361 = vpack.c.b16 %v353, %v353
      %v362 = vpack.c.b16 %v354, %v354
      %v363 = vpack.c.b16 %v355, %v355
      %372 = vst [vmem:[%s208] sm:$0xf] %v356
      %373 = vst [vmem:[%s208 + $0x4] sm:$0xf] %v357
      %374 = vst [vmem:[%s208 + $0x8] sm:$0xf] %v358
      %375 = vst [vmem:[%s208 + $0xc] sm:$0xf] %v359
      %376 = vst [vmem:[%s208 + $0x10] sm:$0xf] %v360
      %377 = vst [vmem:[%s208 + $0x14] sm:$0xf] %v361
      %378 = vst [vmem:[%s208 + $0x18] sm:$0xf] %v362
      %379 = vst [vmem:[%s208 + $0x1c] sm:$0xf] %v363
      %s380 = smul.u32 8, %s19
      %p381 = scmp.lt.s32.totalorder %s18, 1
      %s382 = scalar_select %p381, %s18, 1
      %p383 = scmp.lt.s32.totalorder %s380, 7
      %s384 = scalar_select %p383, %s380, 7
      %s385 = smul.addr %s382, 8
      %s386 = sadd.s32 %s384, %s385
      %s387 = smul.addr %s386, 4
      %s388 = scalar_lea.vmem %s3, %s387
      // Predicated region
      $region33: #{upsample_bn_forward.3} parent=31 // pred_check
        %p389 = pneg %p116
      $region34: #{upsample_bn_forward.3} parent=31 // pred_check_branch
        %391 = sbr.rel (%p389) target = $region36
      $region35: #{upsample_bn_forward.3} parent=31 // pred_region
        %s392 = smul.u32 8, %s19
      $region36: #{upsample_bn_forward.3} parent=31 // pred_fallthru
        _
    $region32: #{upsample_bn_forward.3} parent=5 // pred_fallthru
      _
    %p393 = scmp.le.s32.totalorder 2, %s9
    // Predicated region
    $region37: #{upsample_bn_forward.3} parent=5 // pred_check
      %p394 = pneg %p393
    $region38: #{upsample_bn_forward.3} parent=5 // pred_check_branch
      %396 = sbr.rel (%p394) target = $region40
    $region39: #{upsample_bn_forward.3} parent=5 // pred_region
      %s397 = ssub.s32 %s9, 2
      // Predicated region
      $region41: #{upsample_bn_forward.3} parent=39 // pred_check
        %p398 = pneg %p122
      $region42: #{upsample_bn_forward.3} parent=39 // pred_check_branch
        %400 = sbr.rel (%p398) target = $region44
      $region43: #{upsample_bn_forward.3} parent=39 // pred_region
        %s401 = smul.u32 8, %s21
        %p402 = scmp.lt.s32.totalorder %s20, 1
        %s403 = scalar_select %p402, %s20, 1
        %p404 = scmp.lt.s32.totalorder %s401, 7
        %s405 = scalar_select %p404, %s401, 7
        %s406 = smul.addr %s403, 8
        %s407 = sadd.s32 %s405, %s406
        %s408 = smul.addr %s407, 4
        %s409 = scalar_lea.vmem %s3, %s408
      $region44: #{upsample_bn_forward.3} parent=39 // pred_fallthru
        _
    $region40: #{upsample_bn_forward.3} parent=5 // pred_fallthru
      _
  $region6: #{upsample_bn_forward.3} parent=0 // loop_footer
    %s13 = sadd.s32 1, %s9
  $region7: #{upsample_bn_forward.3} parent=0 // loop_footer_branch
    %8 = sbr.rel target = $region3
  $region8: #{upsample_bn_forward.3} parent=0 // loop_exit
    _

// kernel: upsample_bn_forward.5
$region0: #{upsample_bn_forward.5}
  #allocation0 [shape = 'u32[]', space=smem, size = 0x4, offset = 0x4, fixed_abs, tag = 'smem constant byte address 0x4 - core index']
  #allocation1 [shape = 'u32[144,128]{1,0:T(1,128)}', space=vmem, size = 0x12000, scoped, tag = 'internal scratch']
  %s0 = inlined_call_operand.vmem [shape: bf16[2,4,6,18,32], index: 0, kind: input, shape index: {}]
  %s1 = inlined_call_operand.vmem [shape: bf16[288,32], index: 1, kind: input, shape index: {}]
  %s2 = inlined_call_operand.vmem [shape: f32[1,32], index: 2, kind: input, shape index: {}]
  %s3 = inlined_call_operand.vmem [shape: f32[1,32], index: 3, kind: input, shape index: {}]
  %s4 = inlined_call_operand.hbm [shape: f32[2,4,64,32], index: 4, kind: output, shape index: {}]
  %s5 = sld [smem:[#allocation0]]
  $region49: #{upsample_bn_forward.5} parent=0
    _
  %s7 = ssub.s32 1, %s5
  %s8 = scalar_select 0, %s7, %s5
  $region1: #{upsample_bn_forward.5} parent=0
    #allocation2 [shape = 'u8[65536]{0}', space=vmem, size = 0x10000, scoped, tag = 'output window, operand 0']
    #allocation3 [shape = 's32[2]{0}', space=sflag, size = 0x8, scoped, tag = 'scoped memory for upsample_bn_forward.5']
    %9 = vsyncpa [#allocation3], 0
    %s10 = scalar_lea.sflag [#allocation3], 1
    %11 = vsyncpa %s10, 0
    loop: start=0, step=1, limit=10
    $region2: #{upsample_bn_forward.5} parent=1 // loop_pre_header
      _
    $region3: #{upsample_bn_forward.5} parent=1 // loop_header
      %s13 = sphi 0, %s17
      %p14 = scmp.ge.s32.totalorder %s13, 10
      %s20 = sphi 0, %s32
      %s21 = sphi 0, %s28
      %s22 = sphi 0, %s20
      %s23 = sphi 0, %s21
      %s24 = sphi 0, %s22
      %s25 = sphi 0, %s23
      %s37 = sphi 0, %s39
      %s40 = sphi 0, %s37
      %s41 = sphi 0, %s40
      %s57 = sphi 0, %s41
      %s61 = sphi 0, %s61
      %s63 = sphi 0, %s61
      %s64 = sphi 0, %s63
      %s78 = sphi 0, %s64
      %s82 = sphi 0, %s82
      %s84 = sphi 0, %s82
      %s85 = sphi 0, %s84
      %s99 = sphi 0, %s85
      %s103 = sphi 0, %s103
      %s105 = sphi 0, %s103
      %s106 = sphi 0, %s105
      %s120 = sphi 0, %s106
      %s128 = sphi 0, %s130
      %s131 = sphi 0, %s128
      %s132 = sphi 0, %s131
      %s148 = sphi 0, %s132
    $region4: #{upsample_bn_forward.5} parent=1 // loop_header_branch
      %16 = sbr.rel (%p14) target = $region8
    $region5: #{upsample_bn_forward.5} parent=1 // loop_body
      %s18 = ssub.s32 %s13, 1
      %s19 = ssub.s32 %s13, 2
      %s26 = sadd.s32 1, %s21
      %p27 = scmp.ge.s32.totalorder %s26, 4
      %s28 = scalar_select %p27, 0, %s26
      %s29 = sadd.s32 1, %s20
      %s30 = scalar_select %p27, %s29, %s20
      %p31 = scmp.ge.s32.totalorder %s30, 2
      %s32 = scalar_select %p31, 0, %s30
      %s33 = ssub.s32 %s20, %s32
      %s34 = ssub.s32 %s21, %s28
      %s35 = sor.u32 %s33, %s34
      %p36 = scmp.eq.s32.totalorder %s35, 0
      %s38 = sadd.s32 %s37, 1
      %s39 = scalar_select %p36, %s37, %s38
      %p42 = pneg %p36
      %p43 = scmp.eq.s32.totalorder %s13, 7
      %p44 = por %p42, %p43
      %p45 = scmp.ne.s32.totalorder %s37, %s40
      %p46 = scmp.eq.s32.totalorder %s13, 0
      %p47 = por %p45, %p46
      %p48 = scmp.ne.s32.totalorder %s37, %s40
      %p49 = scmp.eq.s32.totalorder %s18, 7
      %p50 = por %p48, %p49
      %p51 = scmp.ne.s32.totalorder %s40, %s41
      %p52 = scmp.eq.s32.totalorder %s18, 0
      %p53 = por %p51, %p52
      %p54 = scmp.ne.s32.totalorder %s40, %s41
      %p55 = scmp.eq.s32.totalorder %s19, 7
      %p56 = por %p54, %p55
      %p58 = scmp.ne.s32.totalorder %s41, %s57
      %p59 = scmp.eq.s32.totalorder %s19, 0
      %p60 = por %p58, %p59
      %s62 = sadd.s32 %s61, 1
      %p65 = scmp.eq.s32.totalorder %s13, 7
      %p66 = scmp.ne.s32.totalorder %s61, %s63
      %p67 = scmp.eq.s32.totalorder %s13, 0
      %p68 = por %p66, %p67
      %p69 = scmp.ne.s32.totalorder %s61, %s63
      %p70 = scmp.eq.s32.totalorder %s18, 7
      %p71 = por %p69, %p70
      %p72 = scmp.ne.s32.totalorder %s63, %s64
      %p73 = scmp.eq.s32.totalorder %s18, 0
      %p74 = por %p72, %p73
      %p75 = scmp.ne.s32.totalorder %s63, %s64
      %p76 = scmp.eq.s32.totalorder %s19, 7
      %p77 = por %p75, %p76
      %p79 = scmp.ne.s32.totalorder %s64, %s78
      %p80 = scmp.eq.s32.totalorder %s19, 0
      %p81 = por %p79, %p80
      %s83 = sadd.s32 %s82, 1
      %p86 = scmp.eq.s32.totalorder %s13, 7
      %p87 = scmp.ne.s32.totalorder %s82, %s84
      %p88 = scmp.eq.s32.totalorder %s13, 0
      %p89 = por %p87, %p88
      %p90 = scmp.ne.s32.totalorder %s82, %s84
      %p91 = scmp.eq.s32.totalorder %s18, 7
      %p92 = por %p90, %p91
      %p93 = scmp.ne.s32.totalorder %s84, %s85
      %p94 = scmp.eq.s32.totalorder %s18, 0
      %p95 = por %p93, %p94
      %p96 = scmp.ne.s32.totalorder %s84, %s85
      %p97 = scmp.eq.s32.totalorder %s19, 7
      %p98 = por %p96, %p97
      %p100 = scmp.ne.s32.totalorder %s85, %s99
      %p101 = scmp.eq.s32.totalorder %s19, 0
      %p102 = por %p100, %p101
      %s104 = sadd.s32 %s103, 1
      %p107 = scmp.eq.s32.totalorder %s13, 7
      %p108 = scmp.ne.s32.totalorder %s103, %s105
      %p109 = scmp.eq.s32.totalorder %s13, 0
      %p110 = por %p108, %p109
      %p111 = scmp.ne.s32.totalorder %s103, %s105
      %p112 = scmp.eq.s32.totalorder %s18, 7
      %p113 = por %p111, %p112
      %p114 = scmp.ne.s32.totalorder %s105, %s106
      %p115 = scmp.eq.s32.totalorder %s18, 0
      %p116 = por %p114, %p115
      %p117 = scmp.ne.s32.totalorder %s105, %s106
      %p118 = scmp.eq.s32.totalorder %s19, 7
      %p119 = por %p117, %p118
      %p121 = scmp.ne.s32.totalorder %s106, %s120
      %p122 = scmp.eq.s32.totalorder %s19, 0
      %p123 = por %p121, %p122
      %s124 = ssub.s32 %s20, %s32
      %s125 = ssub.s32 %s21, %s28
      %s126 = sor.u32 %s124, %s125
      %p127 = scmp.eq.s32.totalorder %s126, 0
      %s129 = sadd.s32 %s128, 1
      %s130 = scalar_select %p127, %s128, %s129
      %p133 = pneg %p127
      %p134 = scmp.eq.s32.totalorder %s13, 7
      %p135 = por %p133, %p134
      %p136 = scmp.ne.s32.totalorder %s128, %s131
      %p137 = scmp.eq.s32.totalorder %s13, 0
      %p138 = por %p136, %p137
      %p139 = scmp.ne.s32.totalorder %s128, %s131
      %p140 = scmp.eq.s32.totalorder %s18, 7
      %p141 = por %p139, %p140
      %p142 = scmp.ne.s32.totalorder %s131, %s132
      %p143 = scmp.eq.s32.totalorder %s18, 0
      %p144 = por %p142, %p143
      %p145 = scmp.ne.s32.totalorder %s131, %s132
      %p146 = scmp.eq.s32.totalorder %s19, 7
      %p147 = por %p145, %p146
      %p149 = scmp.ne.s32.totalorder %s132, %s148
      %p150 = scmp.eq.s32.totalorder %s19, 0
      %p151 = por %p149, %p150
      %p152 = scmp.le.s32.totalorder 1, %s13
      %p153 = scmp.lt.s32.totalorder %s13, 9
      %p154 = pnand %p152, %p153
      %p155 = pneg %p154
      // Predicated region
      $region9: #{upsample_bn_forward.5} parent=5 // pred_check
        _
      $region10: #{upsample_bn_forward.5} parent=5 // pred_check_branch
        %157 = sbr.rel (%p154) target = $region12
      $region11: #{upsample_bn_forward.5} parent=5 // pred_region
        %s158 = ssub.s32 %s13, 1
        // Predicated region
        $region13: #{upsample_bn_forward.5} parent=11 // pred_check
          %p159 = pneg %p74
        $region14: #{upsample_bn_forward.5} parent=11 // pred_check_branch
          %161 = sbr.rel (%p159) target = $region16
        $region15: #{upsample_bn_forward.5} parent=11 // pred_region
          _
        $region16: #{upsample_bn_forward.5} parent=11 // pred_fallthru
          _
        // Predicated region
        $region17: #{upsample_bn_forward.5} parent=11 // pred_check
          %p162 = pneg %p95
        $region18: #{upsample_bn_forward.5} parent=11 // pred_check_branch
          %164 = sbr.rel (%p162) target = $region20
        $region19: #{upsample_bn_forward.5} parent=11 // pred_region
          _
        $region20: #{upsample_bn_forward.5} parent=11 // pred_fallthru
          _
        // Predicated region
        $region21: #{upsample_bn_forward.5} parent=11 // pred_check
          %p165 = pneg %p116
        $region22: #{upsample_bn_forward.5} parent=11 // pred_check_branch
          %167 = sbr.rel (%p165) target = $region24
        $region23: #{upsample_bn_forward.5} parent=11 // pred_region
          _
        $region24: #{upsample_bn_forward.5} parent=11 // pred_fallthru
          _
      $region12: #{upsample_bn_forward.5} parent=5 // pred_fallthru
        _
      %p168 = scmp.lt.s32.totalorder %s13, 8
      // Predicated region
      $region25: #{upsample_bn_forward.5} parent=5 // pred_check
        %p169 = pneg %p168
      $region26: #{upsample_bn_forward.5} parent=5 // pred_check_branch
        %171 = sbr.rel (%p169) target = $region28
      $region27: #{upsample_bn_forward.5} parent=5 // pred_region
        // Predicated region
        $region29: #{upsample_bn_forward.5} parent=27 // pred_check
          %p172 = pneg %p47
        $region30: #{upsample_bn_forward.5} parent=27 // pred_check_branch
          %174 = sbr.rel (%p172) target = $region32
        $region31: #{upsample_bn_forward.5} parent=27 // pred_region
          %p175 = scmp.lt.s32.totalorder %s20, 1
          %s176 = scalar_select %p175, %s20, 1
          %p177 = scmp.lt.s32.totalorder %s21, 3
          %s178 = scalar_select %p177, %s21, 3
          %s179 = smul.addr %s178, 18
          %s180 = smul.addr %s176, 72
          %s181 = sadd.s32 %s179, %s180
          %s182 = smul.addr %s181, 4
          %s183 = scalar_lea.vmem %s0, %s182
        $region32: #{upsample_bn_forward.5} parent=27 // pred_fallthru
          _
      $region28: #{upsample_bn_forward.5} parent=5 // pred_fallthru
        _
      %p184 = scmp.le.s32.totalorder 1, %s13
      %p185 = scmp.lt.s32.totalorder %s13, 9
      %p186 = pnand %p184, %p185
      %p187 = pneg %p186
      // Predicated region
      $region33: #{upsample_bn_forward.5} parent=5 // pred_check
        _
      $region34: #{upsample_bn_forward.5} parent=5 // pred_check_branch
        %189 = sbr.rel (%p186) target = $region36
      $region35: #{upsample_bn_forward.5} parent=5 // pred_region
        %s190 = ssub.s32 %s13, 1
        %p191 = scmp.lt.s32.totalorder %s22, 1
        %s192 = scalar_select %p191, %s22, 1
        %p193 = scmp.lt.s32.totalorder %s23, 3
        %s194 = scalar_select %p193, %s23, 3
        %s195 = smul.addr %s194, 18
        %s196 = smul.addr %s192, 72
        %s197 = sadd.s32 %s195, %s196
        %s198 = smul.addr %s197, 4
        %s199 = scalar_lea.vmem %s0, %s198
        %p200 = pneg %p53
        %p201 = pneg %p50
        %p202 = pneg %p74
        %p203 = pneg %p71
        %p204 = pneg %p95
        %p205 = pneg %p92
        %p206 = pneg %p116
        %p207 = pneg %p113
        %p208 = pneg %p144
        %p209 = pneg %p141
        %s210 = sand.u32 %s131, 1
        %s211 = scalar_lea.sflag [#allocation3], %s210
        %s212 = sand.u32 %s131, 1
        %s213 = smul.addr %s212, 64
        %s214 = scalar_lea.vmem [#allocation2], %s213
        %p215 = scmp.lt.s32.totalorder %s22, 1
        %s216 = scalar_select %p215, %s22, 1
        %p217 = scmp.lt.s32.totalorder %s23, 3
        %s218 = scalar_select %p217, %s23, 3
        %s219 = smul.addr %s218, 18
        %s220 = smul.addr %s216, 72
        %s221 = sadd.s32 %s219, %s220
        %s222 = smul.addr %s221, 4
        %s223 = scalar_lea.vmem %s0, %s222
        %v225 = vld [vmem:[%s223] sm:$0xf]
        %v226 = vld [vmem:[%s223 + $0x4] sm:$0xf]
        %v227 = vld [vmem:[%s223 + $0x8] sm:$0x1]
        %v228 = vld [vmem:[%s223 + $0xc] sm:$0xf]
        %v229 = vld [vmem:[%s223 + $0x10] sm:$0xf]
        %v230 = vld [vmem:[%s223 + $0x14] sm:$0x1]
        %v231 = vld [vmem:[%s223 + $0x18] sm:$0xf]
        %v232 = vld [vmem:[%s223 + $0x1c] sm:$0xf]
        %v233 = vld [vmem:[%s223 + $0x20] sm:$0x1]
        %v234 = vld [vmem:[%s223 + $0x24] sm:$0xf]
        %v235 = vld [vmem:[%s223 + $0x28] sm:$0xf]
        %v236 = vld [vmem:[%s223 + $0x2c] sm:$0x1]
        %v237 = vld [vmem:[%s223 + $0x30] sm:$0xf]
        %v238 = vld [vmem:[%s223 + $0x34] sm:$0xf]
        %v239 = vld [vmem:[%s223 + $0x38] sm:$0x1]
        %v240 = vld [vmem:[%s223 + $0x3c] sm:$0xf]
        %v241 = vld [vmem:[%s223 + $0x40] sm:$0xf]
        %v242 = vld [vmem:[%s223 + $0x44] sm:$0x1]
        %v251 = vunpack.c.l.b16 %v225
        %v252 = vunpack.c.l.b16 %v226
        %v253 = vunpack.c.l.b16 %v228
        %v254 = vunpack.c.l.b16 %v229
        %v255 = vunpack.c.l.b16 %v231
        %v256 = vunpack.c.l.b16 %v232
        %v257 = vunpack.c.l.b16 %v234
        %v258 = vunpack.c.l.b16 %v235
        %v259 = vpack.c.b16 %v252, %v251
        %v260 = vpack.c.b16 %v254, %v253
        %v261 = vpack.c.b16 %v256, %v255
        %v262 = vpack.c.b16 %v258, %v257
        %v267 = vunpack.c.l.b16 %v227
        %v268 = vunpack.c.l.b16 %v230
        %v269 = vunpack.c.l.b16 %v233
        %v270 = vunpack.c.l.b16 %v236
        %v271 = vpack.c.b16 %v267, %v267
        %v272 = vpack.c.b16 %v268, %v268
        %v273 = vpack.c.b16 %v269, %v269
        %v274 = vpack.c.b16 %v270, %v270
        %vm275 = vsmask.f32 7424
        %v277 = vshrl.u32 %v259, 16
        %v279 = vshll.u32 %v259, 16
        %v281 = vrot.slane %v279, 1
        %v282 = vor.u32 %v277, %v281
        %v284 = vshll.u32 %v271, 16
        %v286 = vrot.slane %v284, 1
        %v287 = vsel %vm275, %v282, %v286
        %v289 = vshrl.u32 %v260, 16
        %v291 = vshll.u32 %v260, 16
        %v293 = vrot.slane %v291, 1
        %v294 = vor.u32 %v289, %v293
        %v296 = vshll.u32 %v272, 16
        %v298 = vrot.slane %v296, 1
        %v299 = vsel %vm275, %v294, %v298
        %v301 = vshrl.u32 %v261, 16
        %v303 = vshll.u32 %v261, 16
        %v305 = vrot.slane %v303, 1
        %v306 = vor.u32 %v301, %v305
        %v308 = vshll.u32 %v273, 16
        %v310 = vrot.slane %v308, 1
        %v311 = vsel %vm275, %v306, %v310
        %v313 = vshrl.u32 %v262, 16
        %v315 = vshll.u32 %v262, 16
        %v317 = vrot.slane %v315, 1
        %v318 = vor.u32 %v313, %v317
        %v320 = vshll.u32 %v274, 16
        %v322 = vrot.slane %v320, 1
        %v323 = vsel %vm275, %v318, %v322
        %324 = vrot.lane.b32.xlu0 %v287, 32
        %v325 = vpop.permute.xlu0 %324
        %326 = vrot.lane.b32.xlu0 %v299, 32
        %v327 = vpop.permute.xlu0 %326
        %328 = vrot.lane.b32.xlu0 %v311, 32
        %v329 = vpop.permute.xlu0 %328
        %330 = vrot.lane.b32.xlu0 %v323, 32
        %v331 = vpop.permute.xlu0 %330
        %vm332 = vcmask 1046528
        %v333 = vrot.slane %v259, 1
        %v334 = vrot.slane %v271, 1
        %v335 = vsel %vm332, %v333, %v334
        %v336 = vrot.slane %v260, 1
        %v337 = vrot.slane %v272, 1
        %v338 = vsel %vm332, %v336, %v337
        %v339 = vrot.slane %v261, 1
        %v340 = vrot.slane %v273, 1
        %v341 = vsel %vm332, %v339, %v340
        %v342 = vrot.slane %v262, 1
        %v343 = vrot.slane %v274, 1
        %v344 = vsel %vm332, %v342, %v343
        %345 = vrot.lane.b32.xlu0 %v335, 64
        %v346 = vpop.permute.xlu0 %345
        %347 = vrot.lane.b32.xlu0 %v338, 64
        %v348 = vpop.permute.xlu0 %347
        %349 = vrot.lane.b32.xlu0 %v341, 64
        %v350 = vpop.permute.xlu0 %349
        %351 = vrot.lane.b32.xlu0 %v344, 64
        %v352 = vpop.permute.xlu0 %351
        %v355 = vunpack.c.l.b16 %v237
        %v356 = vunpack.c.l.b16 %v238
        %v357 = vpack.c.b16 %v356, %v355
        %358 = vrot.lane.b32.xlu0 %v260, 96
        %v359 = vpop.permute.xlu0 %358
        %360 = vrot.lane.b32.xlu0 %v261, 96
        %v361 = vpop.permute.xlu0 %360
        %362 = vrot.lane.b32.xlu0 %v262, 96
        %v363 = vpop.permute.xlu0 %362
        %364 = vrot.lane.b32.xlu0 %v357, 96
        %v365 = vpop.permute.xlu0 %364
        %v367 = vunpack.c.l.b16 %v239
        %v368 = vpack.c.b16 %v367, %v367
        %v370 = vshrl.u32 %v357, 16
        %v372 = vshll.u32 %v357, 16
        %v374 = vrot.slane %v372, 1
        %v375 = vor.u32 %v370, %v374
        %v377 = vshll.u32 %v368, 16
        %v379 = vrot.slane %v377, 1
        %v380 = vsel %vm275, %v375, %v379
        %v381 = vrot.slane %v357, 1
        %v382 = vrot.slane %v368, 1
        %v383 = vsel %vm332, %v381, %v382
        %384 = vrot.lane.b32.xlu0 %v338, 32
        %v385 = vpop.permute.xlu0 %384
        %386 = vrot.lane.b32.xlu0 %v341, 32
        %v387 = vpop.permute.xlu0 %386
        %388 = vrot.lane.b32.xlu0 %v344, 32
        %v389 = vpop.permute.xlu0 %388
        %390 = vrot.lane.b32.xlu0 %v383, 32
        %v391 = vpop.permute.xlu0 %390
        %v394 = vunpack.c.l.b16 %v240
        %v395 = vunpack.c.l.b16 %v241
        %v396 = vpack.c.b16 %v395, %v394
        %397 = vrot.lane.b32.xlu0 %v261, 64
        %v398 = vpop.permute.xlu0 %397
        %399 = vrot.lane.b32.xlu0 %v262, 64
        %v400 = vpop.permute.xlu0 %399
        %401 = vrot.lane.b32.xlu0 %v357, 64
        %v402 = vpop.permute.xlu0 %401
        %403 = vrot.lane.b32.xlu0 %v396, 64
        %v404 = vpop.permute.xlu0 %403
        %v406 = vunpack.c.l.b16 %v242
        %v407 = vpack.c.b16 %v406, %v406
        %v409 = vshrl.u32 %v396, 16
        %v411 = vshll.u32 %v396, 16
        %v413 = vrot.slane %v411, 1
        %v414 = vor.u32 %v409, %v413
        %v416 = vshll.u32 %v407, 16
        %v418 = vrot.slane %v416, 1
        %v419 = vsel %vm275, %v414, %v418
        %420 = vrot.lane.b32.xlu0 %v311, 96
        %v421 = vpop.permute.xlu0 %420
        %422 = vrot.lane.b32.xlu0 %v323, 96
        %v423 = vpop.permute.xlu0 %422
        %424 = vrot.lane.b32.xlu0 %v380, 96
        %v425 = vpop.permute.xlu0 %424
        %426 = vrot.lane.b32.xlu0 %v419, 96
        %v427 = vpop.permute.xlu0 %426
        %v428 = vrot.slane %v396, 1
        %v429 = vrot.slane %v407, 1
        %v430 = vsel %vm332, %v428, %v429
        %vm431 = vcmask 261120
        %v433 = vsel %vm431, %v259, %v325
        %v435 = vsel %vm431, %v260, %v327
        %v437 = vsel %vm431, %v261, %v329
        %v439 = vsel %vm431, %v262, %v331
        %vm440 = vcmask 523264
        %v442 = vsel %vm440, %v433, %v346
        %v444 = vsel %vm440, %v435, %v348
        %v446 = vsel %vm440, %v437, %v350
        %v448 = vsel %vm440, %v439, %v352
        %vm449 = vcmask 785408
        %v451 = vsel %vm449, %v442, %v359
        %v454 = vsel %vm449, %v444, %v361
        %v457 = vsel %vm449, %v446, %v363
        %v460 = vsel %vm449, %v448, %v365
        %v464 = vsel %vm431, %v299, %v385
        %v467 = vsel %vm431, %v311, %v387
        %v470 = vsel %vm431, %v323, %v389
        %v473 = vsel %vm431, %v380, %v391
        %v475 = vsel %vm440, %v464, %v398
        %v477 = vsel %vm440, %v467, %v400
        %v479 = vsel %vm440, %v470, %v402
        %v481 = vsel %vm440, %v473, %v404
        %v483 = vsel %vm449, %v475, %v421
        %v486 = vsel %vm449, %v477, %v423
        %v489 = vsel %vm449, %v479, %v425
        %v492 = vsel %vm449, %v481, %v427
        %v494 = vld [vmem:[%s1] sm:$0xf]
        %v495 = vld [vmem:[%s1 + $0x4] sm:$0xf]
        %v496 = vld [vmem:[%s1 + $0x8] sm:$0xf]
        %v497 = vld [vmem:[%s1 + $0xc] sm:$0xf]
        %v498 = vld [vmem:[%s1 + $0x10] sm:$0xf]
        %v499 = vld [vmem:[%s1 + $0x14] sm:$0xf]
        %v500 = vld [vmem:[%s1 + $0x18] sm:$0xf]
        %v501 = vld [vmem:[%s1 + $0x1c] sm:$0xf]
        %v502 = vld [vmem:[%s1 + $0x20] sm:$0xf]
        %v503 = vld [vmem:[%s1 + $0x24] sm:$0xf]
        %v504 = vld [vmem:[%s1 + $0x28] sm:$0xf]
        %v505 = vld [vmem:[%s1 + $0x2c] sm:$0xf]
        %v506 = vld [vmem:[%s1 + $0x30] sm:$0xf]
        %v507 = vld [vmem:[%s1 + $0x34] sm:$0xf]
        %v508 = vld [vmem:[%s1 + $0x38] sm:$0xf]
        %v509 = vld [vmem:[%s1 + $0x3c] sm:$0xf]
        %v510 = vld [vmem:[%s1 + $0x40] sm:$0xf]
        %v511 = vld [vmem:[%s1 + $0x44] sm:$0xf]
        %v512 = vld [vmem:[%s1 + $0x48] sm:$0xf]
        %v513 = vld [vmem:[%s1 + $0x4c] sm:$0xf]
        %v514 = vld [vmem:[%s1 + $0x50] sm:$0xf]
        %v515 = vld [vmem:[%s1 + $0x54] sm:$0xf]
        %v516 = vld [vmem:[%s1 + $0x58] sm:$0xf]
        %v517 = vld [vmem:[%s1 + $0x5c] sm:$0xf]
        %v518 = vld [vmem:[%s1 + $0x60] sm:$0xf]
        %v519 = vld [vmem:[%s1 + $0x64] sm:$0xf]
        %v520 = vld [vmem:[%s1 + $0x68] sm:$0xf]
        %v521 = vld [vmem:[%s1 + $0x6c] sm:$0xf]
        %v522 = vld [vmem:[%s1 + $0x70] sm:$0xf]
        %v523 = vld [vmem:[%s1 + $0x74] sm:$0xf]
        %v524 = vld [vmem:[%s1 + $0x78] sm:$0xf]
        %v525 = vld [vmem:[%s1 + $0x7c] sm:$0xf]
        %v526 = vld [vmem:[%s1 + $0x80] sm:$0xf]
        %v527 = vld [vmem:[%s1 + $0x84] sm:$0xf]
        %v528 = vld [vmem:[%s1 + $0x88] sm:$0xf]
        %v529 = vld [vmem:[%s1 + $0x8c] sm:$0xf]
        %v566 = vunpack.c.l.b16 %v494
        %v567 = vunpack.c.l.b16 %v495
        %v568 = vunpack.c.l.b16 %v496
        %v569 = vunpack.c.l.b16 %v497
        %v570 = vunpack.c.l.b16 %v498
        %v571 = vunpack.c.l.b16 %v499
        %v572 = vunpack.c.l.b16 %v500
        %v573 = vunpack.c.l.b16 %v501
        %v574 = vunpack.c.l.b16 %v502
        %v575 = vunpack.c.l.b16 %v503
        %v576 = vunpack.c.l.b16 %v504
        %v577 = vunpack.c.l.b16 %v505
        %v578 = vunpack.c.l.b16 %v506
        %v579 = vunpack.c.l.b16 %v507
        %v580 = vunpack.c.l.b16 %v508
        %v581 = vunpack.c.l.b16 %v509
        %v582 = vunpack.c.l.b16 %v510
        %v583 = vunpack.c.l.b16 %v511
        %v584 = vunpack.c.l.b16 %v512
        %v585 = vunpack.c.l.b16 %v513
        %v586 = vunpack.c.l.b16 %v514
        %v587 = vunpack.c.l.b16 %v515
        %v588 = vunpack.c.l.b16 %v516
        %v589 = vunpack.c.l.b16 %v517
        %v590 = vunpack.c.l.b16 %v518
        %v591 = vunpack.c.l.b16 %v519
        %v592 = vunpack.c.l.b16 %v520
        %v593 = vunpack.c.l.b16 %v521
        %v594 = vunpack.c.l.b16 %v522
        %v595 = vunpack.c.l.b16 %v523
        %v596 = vunpack.c.l.b16 %v524
        %v597 = vunpack.c.l.b16 %v525
        %v598 = vunpack.c.l.b16 %v526
        %v599 = vunpack.c.l.b16 %v527
        %v600 = vunpack.c.l.b16 %v528
        %v601 = vunpack.c.l.b16 %v529
        %v602 = vpack.c.b16 %v567, %v566
        %v603 = vpack.c.b16 %v569, %v568
        %v604 = vpack.c.b16 %v571, %v570
        %v605 = vpack.c.b16 %v573, %v572
        %v606 = vpack.c.b16 %v575, %v574
        %v607 = vpack.c.b16 %v577, %v576
        %v608 = vpack.c.b16 %v579, %v578
        %v609 = vpack.c.b16 %v581, %v580
        %v610 = vpack.c.b16 %v583, %v582
        %v611 = vpack.c.b16 %v585, %v584
        %v612 = vpack.c.b16 %v587, %v586
        %v613 = vpack.c.b16 %v589, %v588
        %v614 = vpack.c.b16 %v591, %v590
        %v615 = vpack.c.b16 %v593, %v592
        %v616 = vpack.c.b16 %v595, %v594
        %v617 = vpack.c.b16 %v597, %v596
        %v618 = vpack.c.b16 %v599, %v598
        %v619 = vpack.c.b16 %v601, %v600
        %v639 = vsel %vm431, %v341, 0
        %v642 = vsel %vm431, %v344, 0
        %v645 = vsel %vm431, %v383, 0
        %v648 = vsel %vm431, %v430, 0
        %650 = vmatprep.subr.bf16.mxu0 0
        %651 = vmatpush1.bf16.msra.mxu0 %v609
        %652 = vmatprep.subr.bf16.mxu0 0
        %653 = vmatpush1.bf16.msra.mxu0 %v608
        %654 = vmatprep.subr.bf16.mxu0 0
        %655 = vmatpush1.bf16.msra.mxu0 %v607
        %656 = vmatprep.subr.bf16.mxu0 0
        %657 = vmatpush1.bf16.msra.mxu0 %v606
        %658 = vmatprep.subr.bf16.mxu0 0
        %659 = vmatpush1.bf16.msra.mxu0 %v605
        %660 = vmatprep.subr.bf16.mxu0 0
        %661 = vmatpush1.bf16.msra.mxu0 %v604
        %662 = vmatprep.subr.bf16.mxu0 0
        %663 = vmatpush1.bf16.msra.mxu0 %v603
        %664 = vmatprep.subr.bf16.mxu0 0
        %665 = vmatpush1.bf16.msra.mxu0 %v602
        %666 = vmatprep.subr.bf16.mxu0 0
        %667 = vmatpush2.bf16.msra.mxu0 %v617
        %668 = vmatprep.subr.bf16.mxu0 0
        %669 = vmatpush2.bf16.msra.mxu0 %v616
        %670 = vmatprep.subr.bf16.mxu0 0
        %671 = vmatpush2.bf16.msra.mxu0 %v615
        %672 = vmatprep.subr.bf16.mxu0 0
        %673 = vmatpush2.bf16.msra.mxu0 %v614
        %674 = vmatprep.subr.bf16.mxu0 0
        %675 = vmatpush2.bf16.msra.mxu0 %v613
        %676 = vmatprep.subr.bf16.mxu0 0
        %677 = vmatpush2.bf16.msra.mxu0 %v612
        %678 = vmatprep.subr.bf16.mxu0 0
        %679 = vmatpush2.bf16.msra.mxu0 %v611
        %680 = vmatprep.subr.bf16.mxu0 0
        %681 = vmatpush2.bf16.msra.mxu0 %v610
        %682 = vmatprep.mubr.bf16.mxu0 %v483
        %683 = vmatmul.mubr.bf16.gmra.mxu0 %v451
        %v684 = vpop.f32.mrf.mxu0
        %v685 = vadd.f32 0.0, %v684
        %v686 = vpop.f32.mrf.mxu0
        %v687 = vpop.f32.mrf.mxu0
        %v688 = vadd.f32 0.0, %v687
        %v689 = vpop.f32.mrf.mxu0
        %690 = vmatprep.mubr.bf16.mxu0 %v486
        %691 = vmatmul.mubr.bf16.gmra.mxu0 %v454
        %v692 = vpop.f32.mrf.mxu0
        %v693 = vadd.f32 0.0, %v692
        %v694 = vpop.f32.mrf.mxu0
        %v695 = vpop.f32.mrf.mxu0
        %v696 = vadd.f32 0.0, %v695
        %v697 = vpop.f32.mrf.mxu0
        %698 = vmatprep.mubr.bf16.mxu0 %v489
        %699 = vmatmul.mubr.bf16.gmra.mxu0 %v457
        %v700 = vpop.f32.mrf.mxu0
        %v701 = vadd.f32 0.0, %v700
        %v702 = vpop.f32.mrf.mxu0
        %v703 = vpop.f32.mrf.mxu0
        %v704 = vadd.f32 0.0, %v703
        %v705 = vpop.f32.mrf.mxu0
        %706 = vmatprep.mubr.bf16.mxu0 %v492
        %707 = vmatmul.mubr.bf16.gmra.mxu0 %v460
        %v708 = vpop.f32.mrf.mxu0
        %v709 = vadd.f32 0.0, %v708
        %v710 = vpop.f32.mrf.mxu0
        %v711 = vpop.f32.mrf.mxu0
        %v712 = vadd.f32 0.0, %v711
        %v713 = vpop.f32.mrf.mxu0
        %714 = vdwg.mxu0
        %715 = vmatprep.subr.bf16.mxu0 0
        %716 = vmatpush1.bf16.msra.mxu0 0
        %717 = vmatprep.subr.bf16.mxu0 0
        %718 = vmatpush1.bf16.msra.mxu0 0
        %719 = vmatprep.subr.bf16.mxu0 0
        %720 = vmatpush1.bf16.msra.mxu0 0
        %721 = vmatprep.subr.bf16.mxu0 0
        %722 = vmatpush1.bf16.msra.mxu0 0
        %723 = vmatprep.subr.bf16.mxu0 0
        %724 = vmatpush1.bf16.msra.mxu0 0
        %725 = vmatprep.subr.bf16.mxu0 0
        %726 = vmatpush1.bf16.msra.mxu0 0
        %727 = vmatprep.subr.bf16.mxu0 0
        %728 = vmatpush1.bf16.msra.mxu0 %v619
        %729 = vmatprep.subr.bf16.mxu0 0
        %730 = vmatpush1.bf16.msra.mxu0 %v618
        %731 = vmatprep.subr.bf16.mxu0 0
        %732 = vmatpush2.bf16.msra.mxu0 0
        %733 = vmatprep.subr.bf16.mxu0 0
        %734 = vmatpush2.bf16.msra.mxu0 0
        %735 = vmatprep.subr.bf16.mxu0 0
        %736 = vmatpush2.bf16.msra.mxu0 0
        %737 = vmatprep.subr.bf16.mxu0 0
        %738 = vmatpush2.bf16.msra.mxu0 0
        %739 = vmatprep.subr.bf16.mxu0 0
        %740 = vmatpush2.bf16.msra.mxu0 0
        %741 = vmatprep.subr.bf16.mxu0 0
        %742 = vmatpush2.bf16.msra.mxu0 0
        %743 = vmatprep.subr.bf16.mxu0 0
        %744 = vmatpush2.bf16.msra.mxu0 0
        %745 = vmatprep.subr.bf16.mxu0 0
        %746 = vmatpush2.bf16.msra.mxu0 0
        %747 = vmatprep.mubr.bf16.mxu0 0
        %748 = vmatmul.mubr.bf16.gmra.mxu0 %v639
        %v749 = vpop.f32.mrf.mxu0
        %v750 = vadd.f32 %v685, %v749
        %v751 = vpop.f32.mrf.mxu0
        %v752 = vpop.f32.mrf.mxu0
        %v753 = vadd.f32 %v688, %v752
        %v754 = vpop.f32.mrf.mxu0
        %755 = vmatprep.mubr.bf16.mxu0 0
        %756 = vmatmul.mubr.bf16.gmra.mxu0 %v642
        %v757 = vpop.f32.mrf.mxu0
        %v758 = vadd.f32 %v693, %v757
        %v759 = vpop.f32.mrf.mxu0
        %v760 = vpop.f32.mrf.mxu0
        %v761 = vadd.f32 %v696, %v760
        %v762 = vpop.f32.mrf.mxu0
        %763 = vmatprep.mubr.bf16.mxu0 0
        %764 = vmatmul.mubr.bf16.gmra.mxu0 %v645
        %v765 = vpop.f32.mrf.mxu0
        %v766 = vadd.f32 %v701, %v765
        %v767 = vpop.f32.mrf.mxu0
        %v768 = vpop.f32.mrf.mxu0
        %v769 = vadd.f32 %v704, %v768
        %v770 = vpop.f32.mrf.mxu0
        %771 = vmatprep.mubr.bf16.mxu0 0
        %772 = vmatmul.mubr.bf16.gmra.mxu0 %v648
        %v773 = vpop.f32.mrf.mxu0
        %v774 = vadd.f32 %v709, %v773
        %v775 = vpop.f32.mrf.mxu0
        %v776 = vpop.f32.mrf.mxu0
        %v777 = vadd.f32 %v712, %v776
        %v778 = vpop.f32.mrf.mxu0
        %779 = vdwg.mxu0
        %v780 = vld [vmem:[%s2] sm:$0x1]
        %v782 = vlaneseq
        %v783 = vshrl.u32 %v782, 7
        %v784 = vsub.s32 0, %v783
        %v785 = vrot.slane %v780, %v784
        %v787 = vmul.f32 %v750, %v785
        %v788 = vmul.f32 %v753, %v785
        %v789 = vmul.f32 %v758, %v785
        %v790 = vmul.f32 %v761, %v785
        %v791 = vmul.f32 %v766, %v785
        %v792 = vmul.f32 %v769, %v785
        %v793 = vmul.f32 %v774, %v785
        %v794 = vmul.f32 %v777, %v785
        %v795 = vld [vmem:[%s3] sm:$0x1]
        %v797 = vlaneseq
        %v798 = vshrl.u32 %v797, 7
        %v799 = vsub.s32 0, %v798
        %v800 = vrot.slane %v795, %v799
        %v802 = vadd.f32 %v787, %v800
        %v803 = vadd.f32 %v788, %v800
        %v804 = vadd.f32 %v789, %v800
        %v805 = vadd.f32 %v790, %v800
        %v806 = vadd.f32 %v791, %v800
        %v807 = vadd.f32 %v792, %v800
        %v808 = vadd.f32 %v793, %v800
        %v809 = vadd.f32 %v794, %v800
        %vm810 = vcmp.gt.f32.partialorder %v802, 0.0
        %vm811 = vcmp.gt.f32.partialorder %v803, 0.0
        %vm812 = vcmp.gt.f32.partialorder %v804, 0.0
        %vm813 = vcmp.gt.f32.partialorder %v805, 0.0
        %vm814 = vcmp.gt.f32.partialorder %v806, 0.0
        %vm815 = vcmp.gt.f32.partialorder %v807, 0.0
        %vm816 = vcmp.gt.f32.partialorder %v808, 0.0
        %vm817 = vcmp.gt.f32.partialorder %v809, 0.0
        %v818 = vmul.f32 %v802, 0.01
        %v819 = vmul.f32 %v803, 0.01
        %v820 = vmul.f32 %v804, 0.01
        %v821 = vmul.f32 %v805, 0.01
        %v822 = vmul.f32 %v806, 0.01
        %v823 = vmul.f32 %v807, 0.01
        %v824 = vmul.f32 %v808, 0.01
        %v825 = vmul.f32 %v809, 0.01
        %v826 = vsel %vm810, %v802, %v818
        %v827 = vsel %vm811, %v803, %v819
        %v828 = vsel %vm812, %v804, %v820
        %v829 = vsel %vm813, %v805, %v821
        %v830 = vsel %vm814, %v806, %v822
        %v831 = vsel %vm815, %v807, %v823
        %v832 = vsel %vm816, %v808, %v824
        %v833 = vsel %vm817, %v809, %v825
        %834 = vst.msk [vmem:[%s214] sm:$0xff] %vm431, %v826
        %835 = vst.msk [vmem:[%s214 + $0x8] sm:$0xff] %vm431, %v827
        %836 = vst.msk [vmem:[%s214 + $0x10] sm:$0xff] %vm431, %v828
        %837 = vst.msk [vmem:[%s214 + $0x18] sm:$0xff] %vm431, %v829
        %838 = vst.msk [vmem:[%s214 + $0x20] sm:$0xff] %vm431, %v830
        %839 = vst.msk [vmem:[%s214 + $0x28] sm:$0xff] %vm431, %v831
        %840 = vst.msk [vmem:[%s214 + $0x30] sm:$0xff] %vm431, %v832
        %841 = vst.msk [vmem:[%s214 + $0x38] sm:$0xff] %vm431, %v833
        %s842 = sand.u32 %s131, 1
        %s843 = scalar_lea.sflag [#allocation3], %s842
        %s844 = sand.u32 %s131, 1
        %s845 = smul.addr %s844, 64
        %s846 = scalar_lea.vmem [#allocation2], %s845
        // Predicated region
        $region37: #{upsample_bn_forward.5} parent=35 // pred_check
          %p847 = pneg %p141
        $region38: #{upsample_bn_forward.5} parent=35 // pred_check_branch
          %849 = sbr.rel (%p847) target = $region40
        $region39: #{upsample_bn_forward.5} parent=35 // pred_region
          %s851 = ssub.s32 1024, 1024
          %852 = vsyncadd %s843, %s851
          %s853 = smul.addr %s23, 8
          %s854 = smul.addr %s22, 32
          %s855 = sadd.s32 %s853, %s854
          %s856 = smul.addr %s855, 128
          %s857 = scalar_lea.hbm %s4, %s856
          %s858 = sshll.u32 %s846, 4
          %s859 = int_to_ptr.vmem [resolvable:$true] %s858
          %864 = dma.vmem_to_hbm [thread:$0]  %s859, 1024, %s857, %s843, 128, 128, 8
        $region40: #{upsample_bn_forward.5} parent=35 // pred_fallthru
          _
      $region36: #{upsample_bn_forward.5} parent=5 // pred_fallthru
        _
      %p865 = scmp.le.s32.totalorder 2, %s13
      // Predicated region
      $region41: #{upsample_bn_forward.5} parent=5 // pred_check
        %p866 = pneg %p865
      $region42: #{upsample_bn_forward.5} parent=5 // pred_check_branch
        %868 = sbr.rel (%p866) target = $region44
      $region43: #{upsample_bn_forward.5} parent=5 // pred_region
        %s869 = ssub.s32 %s13, 2
        // Predicated region
        $region45: #{upsample_bn_forward.5} parent=43 // pred_check
          %p870 = pneg %p147
        $region46: #{upsample_bn_forward.5} parent=43 // pred_check_branch
          %872 = sbr.rel (%p870) target = $region48
        $region47: #{upsample_bn_forward.5} parent=43 // pred_region
          %s873 = sand.u32 %s132, 1
          %s874 = scalar_lea.sflag [#allocation3], %s873
          %s875 = sand.u32 %s132, 1
          %s876 = smul.addr %s875, 64
          %s877 = scalar_lea.vmem [#allocation2], %s876
          %878 = dma.done %s874, 1024
        $region48: #{upsample_bn_forward.5} parent=43 // pred_fallthru
          _
      $region44: #{upsample_bn_forward.5} parent=5 // pred_fallthru
        _
    $region6: #{upsample_bn_forward.5} parent=1 // loop_footer
      %s17 = sadd.s32 1, %s13
    $region7: #{upsample_bn_forward.5} parent=1 // loop_footer_branch
      %12 = sbr.rel target = $region3
    $region8: #{upsample_bn_forward.5} parent=1 // loop_exit
      _
    %879 = vsyncpa [#allocation3], 1
    %s880 = scalar_lea.sflag [#allocation3], 1
    %881 = vsyncpa %s880, 1

// kernel: upsample_bn_forward.4
$region0: #{upsample_bn_forward.4}
  #allocation0 [shape = 'u32[]', space=smem, size = 0x4, offset = 0x4, fixed_abs, tag = 'smem constant byte address 0x4 - core index']
  #allocation1 [shape = 'u32[144,128]{1,0:T(1,128)}', space=vmem, size = 0x12000, scoped, tag = 'internal scratch']
  %s0 = inlined_call_operand.vmem [shape: bf16[2,4,6,18,32], index: 0, kind: input, shape index: {}]
  %s1 = inlined_call_operand.vmem [shape: bf16[2,4,6,18,16], index: 1, kind: input, shape index: {}]
  %s2 = inlined_call_operand.vmem [shape: bf16[288,32], index: 2, kind: input, shape index: {}]
  %s3 = inlined_call_operand.vmem [shape: bf16[144,32], index: 3, kind: input, shape index: {}]
  %s4 = inlined_call_operand.vmem [shape: f32[1,32], index: 4, kind: input, shape index: {}]
  %s5 = inlined_call_operand.vmem [shape: f32[1,32], index: 5, kind: input, shape index: {}]
  %s6 = inlined_call_operand.vmem [shape: bf16[2,4,64,32], index: 6, kind: output, shape index: {}]
  %s7 = sld [smem:[#allocation0]]
  $region57: #{upsample_bn_forward.4} parent=0
    _
  %s9 = ssub.s32 1, %s7
  %s10 = scalar_select 0, %s9, %s7
  loop: start=0, step=1, limit=10
  $region2: #{upsample_bn_forward.4} parent=0 // loop_pre_header
    _
  $region3: #{upsample_bn_forward.4} parent=0 // loop_header
    %s12 = sphi 0, %s16
    %p13 = scmp.ge.s32.totalorder %s12, 10
    %s19 = sphi 0, %s31
    %s20 = sphi 0, %s27
    %s21 = sphi 0, %s19
    %s22 = sphi 0, %s20
    %s23 = sphi 0, %s21
    %s24 = sphi 0, %s22
    %s36 = sphi 0, %s38
    %s39 = sphi 0, %s36
    %s40 = sphi 0, %s39
    %s56 = sphi 0, %s40
    %s64 = sphi 0, %s66
    %s67 = sphi 0, %s64
    %s68 = sphi 0, %s67
    %s84 = sphi 0, %s68
    %s88 = sphi 0, %s88
    %s90 = sphi 0, %s88
    %s91 = sphi 0, %s90
    %s105 = sphi 0, %s91
    %s109 = sphi 0, %s109
    %s111 = sphi 0, %s109
    %s112 = sphi 0, %s111
    %s126 = sphi 0, %s112
    %s130 = sphi 0, %s130
    %s132 = sphi 0, %s130
    %s133 = sphi 0, %s132
    %s147 = sphi 0, %s133
    %s151 = sphi 0, %s151
    %s153 = sphi 0, %s151
    %s154 = sphi 0, %s153
    %s168 = sphi 0, %s154
    %s176 = sphi 0, %s178
    %s179 = sphi 0, %s176
    %s180 = sphi 0, %s179
    %s196 = sphi 0, %s180
  $region4: #{upsample_bn_forward.4} parent=0 // loop_header_branch
    %15 = sbr.rel (%p13) target = $region8
  $region5: #{upsample_bn_forward.4} parent=0 // loop_body
    %s17 = ssub.s32 %s12, 1
    %s18 = ssub.s32 %s12, 2
    %s25 = sadd.s32 1, %s20
    %p26 = scmp.ge.s32.totalorder %s25, 4
    %s27 = scalar_select %p26, 0, %s25
    %s28 = sadd.s32 1, %s19
    %s29 = scalar_select %p26, %s28, %s19
    %p30 = scmp.ge.s32.totalorder %s29, 2
    %s31 = scalar_select %p30, 0, %s29
    %s32 = ssub.s32 %s19, %s31
    %s33 = ssub.s32 %s20, %s27
    %s34 = sor.u32 %s32, %s33
    %p35 = scmp.eq.s32.totalorder %s34, 0
    %s37 = sadd.s32 %s36, 1
    %s38 = scalar_select %p35, %s36, %s37
    %p41 = pneg %p35
    %p42 = scmp.eq.s32.totalorder %s12, 7
    %p43 = por %p41, %p42
    %p44 = scmp.ne.s32.totalorder %s36, %s39
    %p45 = scmp.eq.s32.totalorder %s12, 0
    %p46 = por %p44, %p45
    %p47 = scmp.ne.s32.totalorder %s36, %s39
    %p48 = scmp.eq.s32.totalorder %s17, 7
    %p49 = por %p47, %p48
    %p50 = scmp.ne.s32.totalorder %s39, %s40
    %p51 = scmp.eq.s32.totalorder %s17, 0
    %p52 = por %p50, %p51
    %p53 = scmp.ne.s32.totalorder %s39, %s40
    %p54 = scmp.eq.s32.totalorder %s18, 7
    %p55 = por %p53, %p54
    %p57 = scmp.ne.s32.totalorder %s40, %s56
    %p58 = scmp.eq.s32.totalorder %s18, 0
    %p59 = por %p57, %p58
    %s60 = ssub.s32 %s19, %s31
    %s61 = ssub.s32 %s20, %s27
    %s62 = sor.u32 %s60, %s61
    %p63 = scmp.eq.s32.totalorder %s62, 0
    %s65 = sadd.s32 %s64, 1
    %s66 = scalar_select %p63, %s64, %s65
    %p69 = pneg %p63
    %p70 = scmp.eq.s32.totalorder %s12, 7
    %p71 = por %p69, %p70
    %p72 = scmp.ne.s32.totalorder %s64, %s67
    %p73 = scmp.eq.s32.totalorder %s12, 0
    %p74 = por %p72, %p73
    %p75 = scmp.ne.s32.totalorder %s64, %s67
    %p76 = scmp.eq.s32.totalorder %s17, 7
    %p77 = por %p75, %p76
    %p78 = scmp.ne.s32.totalorder %s67, %s68
    %p79 = scmp.eq.s32.totalorder %s17, 0
    %p80 = por %p78, %p79
    %p81 = scmp.ne.s32.totalorder %s67, %s68
    %p82 = scmp.eq.s32.totalorder %s18, 7
    %p83 = por %p81, %p82
    %p85 = scmp.ne.s32.totalorder %s68, %s84
    %p86 = scmp.eq.s32.totalorder %s18, 0
    %p87 = por %p85, %p86
    %s89 = sadd.s32 %s88, 1
    %p92 = scmp.eq.s32.totalorder %s12, 7
    %p93 = scmp.ne.s32.totalorder %s88, %s90
    %p94 = scmp.eq.s32.totalorder %s12, 0
    %p95 = por %p93, %p94
    %p96 = scmp.ne.s32.totalorder %s88, %s90
    %p97 = scmp.eq.s32.totalorder %s17, 7
    %p98 = por %p96, %p97
    %p99 = scmp.ne.s32.totalorder %s90, %s91
    %p100 = scmp.eq.s32.totalorder %s17, 0
    %p101 = por %p99, %p100
    %p102 = scmp.ne.s32.totalorder %s90, %s91
    %p103 = scmp.eq.s32.totalorder %s18, 7
    %p104 = por %p102, %p103
    %p106 = scmp.ne.s32.totalorder %s91, %s105
    %p107 = scmp.eq.s32.totalorder %s18, 0
    %p108 = por %p106, %p107
    %s110 = sadd.s32 %s109, 1
    %p113 = scmp.eq.s32.totalorder %s12, 7
    %p114 = scmp.ne.s32.totalorder %s109, %s111
    %p115 = scmp.eq.s32.totalorder %s12, 0
    %p116 = por %p114, %p115
    %p117 = scmp.ne.s32.totalorder %s109, %s111
    %p118 = scmp.eq.s32.totalorder %s17, 7
    %p119 = por %p117, %p118
    %p120 = scmp.ne.s32.totalorder %s111, %s112
    %p121 = scmp.eq.s32.totalorder %s17, 0
    %p122 = por %p120, %p121
    %p123 = scmp.ne.s32.totalorder %s111, %s112
    %p124 = scmp.eq.s32.totalorder %s18, 7
    %p125 = por %p123, %p124
    %p127 = scmp.ne.s32.totalorder %s112, %s126
    %p128 = scmp.eq.s32.totalorder %s18, 0
    %p129 = por %p127, %p128
    %s131 = sadd.s32 %s130, 1
    %p134 = scmp.eq.s32.totalorder %s12, 7
    %p135 = scmp.ne.s32.totalorder %s130, %s132
    %p136 = scmp.eq.s32.totalorder %s12, 0
    %p137 = por %p135, %p136
    %p138 = scmp.ne.s32.totalorder %s130, %s132
    %p139 = scmp.eq.s32.totalorder %s17, 7
    %p140 = por %p138, %p139
    %p141 = scmp.ne.s32.totalorder %s132, %s133
    %p142 = scmp.eq.s32.totalorder %s17, 0
    %p143 = por %p141, %p142
    %p144 = scmp.ne.s32.totalorder %s132, %s133
    %p145 = scmp.eq.s32.totalorder %s18, 7
    %p146 = por %p144, %p145
    %p148 = scmp.ne.s32.totalorder %s133, %s147
    %p149 = scmp.eq.s32.totalorder %s18, 0
    %p150 = por %p148, %p149
    %s152 = sadd.s32 %s151, 1
    %p155 = scmp.eq.s32.totalorder %s12, 7
    %p156 = scmp.ne.s32.totalorder %s151, %s153
    %p157 = scmp.eq.s32.totalorder %s12, 0
    %p158 = por %p156, %p157
    %p159 = scmp.ne.s32.totalorder %s151, %s153
    %p160 = scmp.eq.s32.totalorder %s17, 7
    %p161 = por %p159, %p160
    %p162 = scmp.ne.s32.totalorder %s153, %s154
    %p163 = scmp.eq.s32.totalorder %s17, 0
    %p164 = por %p162, %p163
    %p165 = scmp.ne.s32.totalorder %s153, %s154
    %p166 = scmp.eq.s32.totalorder %s18, 7
    %p167 = por %p165, %p166
    %p169 = scmp.ne.s32.totalorder %s154, %s168
    %p170 = scmp.eq.s32.totalorder %s18, 0
    %p171 = por %p169, %p170
    %s172 = ssub.s32 %s19, %s31
    %s173 = ssub.s32 %s20, %s27
    %s174 = sor.u32 %s172, %s173
    %p175 = scmp.eq.s32.totalorder %s174, 0
    %s177 = sadd.s32 %s176, 1
    %s178 = scalar_select %p175, %s176, %s177
    %p181 = pneg %p175
    %p182 = scmp.eq.s32.totalorder %s12, 7
    %p183 = por %p181, %p182
    %p184 = scmp.ne.s32.totalorder %s176, %s179
    %p185 = scmp.eq.s32.totalorder %s12, 0
    %p186 = por %p184, %p185
    %p187 = scmp.ne.s32.totalorder %s176, %s179
    %p188 = scmp.eq.s32.totalorder %s17, 7
    %p189 = por %p187, %p188
    %p190 = scmp.ne.s32.totalorder %s179, %s180
    %p191 = scmp.eq.s32.totalorder %s17, 0
    %p192 = por %p190, %p191
    %p193 = scmp.ne.s32.totalorder %s179, %s180
    %p194 = scmp.eq.s32.totalorder %s18, 7
    %p195 = por %p193, %p194
    %p197 = scmp.ne.s32.totalorder %s180, %s196
    %p198 = scmp.eq.s32.totalorder %s18, 0
    %p199 = por %p197, %p198
    %p200 = scmp.le.s32.totalorder 1, %s12
    %p201 = scmp.lt.s32.totalorder %s12, 9
    %p202 = pnand %p200, %p201
    %p203 = pneg %p202
    // Predicated region
    $region9: #{upsample_bn_forward.4} parent=5 // pred_check
      _
    $region10: #{upsample_bn_forward.4} parent=5 // pred_check_branch
      %205 = sbr.rel (%p202) target = $region12
    $region11: #{upsample_bn_forward.4} parent=5 // pred_region
      %s206 = ssub.s32 %s12, 1
      // Predicated region
      $region13: #{upsample_bn_forward.4} parent=11 // pred_check
        %p207 = pneg %p101
      $region14: #{upsample_bn_forward.4} parent=11 // pred_check_branch
        %209 = sbr.rel (%p207) target = $region16
      $region15: #{upsample_bn_forward.4} parent=11 // pred_region
        _
      $region16: #{upsample_bn_forward.4} parent=11 // pred_fallthru
        _
      // Predicated region
      $region17: #{upsample_bn_forward.4} parent=11 // pred_check
        %p210 = pneg %p122
      $region18: #{upsample_bn_forward.4} parent=11 // pred_check_branch
        %212 = sbr.rel (%p210) target = $region20
      $region19: #{upsample_bn_forward.4} parent=11 // pred_region
        _
      $region20: #{upsample_bn_forward.4} parent=11 // pred_fallthru
        _
      // Predicated region
      $region21: #{upsample_bn_forward.4} parent=11 // pred_check
        %p213 = pneg %p143
      $region22: #{upsample_bn_forward.4} parent=11 // pred_check_branch
        %215 = sbr.rel (%p213) target = $region24
      $region23: #{upsample_bn_forward.4} parent=11 // pred_region
        _
      $region24: #{upsample_bn_forward.4} parent=11 // pred_fallthru
        _
      // Predicated region
      $region25: #{upsample_bn_forward.4} parent=11 // pred_check
        %p216 = pneg %p164
      $region26: #{upsample_bn_forward.4} parent=11 // pred_check_branch
        %218 = sbr.rel (%p216) target = $region28
      $region27: #{upsample_bn_forward.4} parent=11 // pred_region
        _
      $region28: #{upsample_bn_forward.4} parent=11 // pred_fallthru
        _
    $region12: #{upsample_bn_forward.4} parent=5 // pred_fallthru
      _
    %p219 = scmp.lt.s32.totalorder %s12, 8
    // Predicated region
    $region29: #{upsample_bn_forward.4} parent=5 // pred_check
      %p220 = pneg %p219
    $region30: #{upsample_bn_forward.4} parent=5 // pred_check_branch
      %222 = sbr.rel (%p220) target = $region32
    $region31: #{upsample_bn_forward.4} parent=5 // pred_region
      // Predicated region
      $region33: #{upsample_bn_forward.4} parent=31 // pred_check
        %p223 = pneg %p46
      $region34: #{upsample_bn_forward.4} parent=31 // pred_check_branch
        %225 = sbr.rel (%p223) target = $region36
      $region35: #{upsample_bn_forward.4} parent=31 // pred_region
        %p226 = scmp.lt.s32.totalorder %s19, 1
        %s227 = scalar_select %p226, %s19, 1
        %p228 = scmp.lt.s32.totalorder %s20, 3
        %s229 = scalar_select %p228, %s20, 3
        %s230 = smul.addr %s229, 18
        %s231 = smul.addr %s227, 72
        %s232 = sadd.s32 %s230, %s231
        %s233 = smul.addr %s232, 4
        %s234 = scalar_lea.vmem %s0, %s233
      $region36: #{upsample_bn_forward.4} parent=31 // pred_fallthru
        _
      // Predicated region
      $region37: #{upsample_bn_forward.4} parent=31 // pred_check
        %p235 = pneg %p74
      $region38: #{upsample_bn_forward.4} parent=31 // pred_check_branch
        %237 = sbr.rel (%p235) target = $region40
      $region39: #{upsample_bn_forward.4} parent=31 // pred_region
        %p238 = scmp.lt.s32.totalorder %s19, 1
        %s239 = scalar_select %p238, %s19, 1
        %p240 = scmp.lt.s32.totalorder %s20, 3
        %s241 = scalar_select %p240, %s20, 3
        %s242 = smul.addr %s241, 18
        %s243 = smul.addr %s239, 72
        %s244 = sadd.s32 %s242, %s243
        %s245 = smul.addr %s244, 4
        %s246 = scalar_lea.vmem %s1, %s245
      $region40: #{upsample_bn_forward.4} parent=31 // pred_fallthru
        _
    $region32: #{upsample_bn_forward.4} parent=5 // pred_fallthru
      _
    %p247 = scmp.le.s32.totalorder 1, %s12
    %p248 = scmp.lt.s32.totalorder %s12, 9
    %p249 = pnand %p247, %p248
    %p250 = pneg %p249
    // Predicated region
    $region41: #{upsample_bn_forward.4} parent=5 // pred_check
      _
    $region42: #{upsample_bn_forward.4} parent=5 // pred_check_branch
      %252 = sbr.rel (%p249) target = $region44
    $region43: #{upsample_bn_forward.4} parent=5 // pred_region
      %s253 = ssub.s32 %s12, 1
      %p254 = scmp.lt.s32.totalorder %s21, 1
      %s255 = scalar_select %p254, %s21, 1
      %p256 = scmp.lt.s32.totalorder %s22, 3
      %s257 = scalar_select %p256, %s22, 3
      %s258 = smul.addr %s257, 18
      %s259 = smul.addr %s255, 72
      %s260 = sadd.s32 %s258, %s259
      %s261 = smul.addr %s260, 4
      %s262 = scalar_lea.vmem %s0, %s261
      %p263 = pneg %p52
      %p264 = pneg %p49
      %p265 = scmp.lt.s32.totalorder %s21, 1
      %s266 = scalar_select %p265, %s21, 1
      %p267 = scmp.lt.s32.totalorder %s22, 3
      %s268 = scalar_select %p267, %s22, 3
      %s269 = smul.addr %s268, 18
      %s270 = smul.addr %s266, 72
      %s271 = sadd.s32 %s269, %s270
      %s272 = smul.addr %s271, 4
      %s273 = scalar_lea.vmem %s1, %s272
      %p274 = pneg %p80
      %p275 = pneg %p77
      %p276 = pneg %p101
      %p277 = pneg %p98
      %p278 = pneg %p122
      %p279 = pneg %p119
      %p280 = pneg %p143
      %p281 = pneg %p140
      %p282 = pneg %p164
      %p283 = pneg %p161
      %p284 = pneg %p192
      %p285 = pneg %p189
      %p286 = scmp.lt.s32.totalorder %s21, 1
      %s287 = scalar_select %p286, %s21, 1
      %p288 = scmp.lt.s32.totalorder %s22, 3
      %s289 = scalar_select %p288, %s22, 3
      %s290 = smul.addr %s289, 8
      %s291 = smul.addr %s287, 32
      %s292 = sadd.s32 %s290, %s291
      %s293 = smul.addr %s292, 4
      %s294 = scalar_lea.vmem %s6, %s293
      %p295 = scmp.lt.s32.totalorder %s21, 1
      %s296 = scalar_select %p295, %s21, 1
      %p297 = scmp.lt.s32.totalorder %s22, 3
      %s298 = scalar_select %p297, %s22, 3
      %s299 = smul.addr %s298, 18
      %s300 = smul.addr %s296, 72
      %s301 = sadd.s32 %s299, %s300
      %s302 = smul.addr %s301, 4
      %s303 = scalar_lea.vmem %s0, %s302
      %p304 = scmp.lt.s32.totalorder %s21, 1
      %s305 = scalar_select %p304, %s21, 1
      %p306 = scmp.lt.s32.totalorder %s22, 3
      %s307 = scalar_select %p306, %s22, 3
      %s308 = smul.addr %s307, 18
      %s309 = smul.addr %s305, 72
      %s310 = sadd.s32 %s308, %s309
      %s311 = smul.addr %s310, 4
      %s312 = scalar_lea.vmem %s1, %s311
      %p313 = scmp.lt.s32.totalorder %s21, 1
      %s314 = scalar_select %p313, %s21, 1
      %p315 = scmp.lt.s32.totalorder %s22, 3
      %s316 = scalar_select %p315, %s22, 3
      %s317 = smul.addr %s316, 8
      %s318 = smul.addr %s314, 32
      %s319 = sadd.s32 %s317, %s318
      %s320 = smul.addr %s319, 4
      %s321 = scalar_lea.vmem %s6, %s320
      %v323 = vld [vmem:[%s303] sm:$0xf]
      %v324 = vld [vmem:[%s303 + $0x4] sm:$0xf]
      %v325 = vld [vmem:[%s303 + $0x8] sm:$0x1]
      %v326 = vld [vmem:[%s303 + $0xc] sm:$0xf]
      %v327 = vld [vmem:[%s303 + $0x10] sm:$0xf]
      %v328 = vld [vmem:[%s303 + $0x14] sm:$0x1]
      %v329 = vld [vmem:[%s303 + $0x18] sm:$0xf]
      %v330 = vld [vmem:[%s303 + $0x1c] sm:$0xf]
      %v331 = vld [vmem:[%s303 + $0x20] sm:$0x1]
      %v332 = vld [vmem:[%s303 + $0x24] sm:$0xf]
      %v333 = vld [vmem:[%s303 + $0x28] sm:$0xf]
      %v334 = vld [vmem:[%s303 + $0x2c] sm:$0x1]
      %v335 = vld [vmem:[%s303 + $0x30] sm:$0xf]
      %v336 = vld [vmem:[%s303 + $0x34] sm:$0xf]
      %v337 = vld [vmem:[%s303 + $0x38] sm:$0x1]
      %v338 = vld [vmem:[%s303 + $0x3c] sm:$0xf]
      %v339 = vld [vmem:[%s303 + $0x40] sm:$0xf]
      %v340 = vld [vmem:[%s303 + $0x44] sm:$0x1]
      %v349 = vunpack.c.l.b16 %v323
      %v350 = vunpack.c.l.b16 %v324
      %v351 = vunpack.c.l.b16 %v326
      %v352 = vunpack.c.l.b16 %v327
      %v353 = vunpack.c.l.b16 %v329
      %v354 = vunpack.c.l.b16 %v330
      %v355 = vunpack.c.l.b16 %v332
      %v356 = vunpack.c.l.b16 %v333
      %v357 = vpack.c.b16 %v350, %v349
      %v358 = vpack.c.b16 %v352, %v351
      %v359 = vpack.c.b16 %v354, %v353
      %v360 = vpack.c.b16 %v356, %v355
      %v365 = vunpack.c.l.b16 %v325
      %v366 = vunpack.c.l.b16 %v328
      %v367 = vunpack.c.l.b16 %v331
      %v368 = vunpack.c.l.b16 %v334
      %v369 = vpack.c.b16 %v365, %v365
      %v370 = vpack.c.b16 %v366, %v366
      %v371 = vpack.c.b16 %v367, %v367
      %v372 = vpack.c.b16 %v368, %v368
      %vm373 = vsmask.f32 7424
      %v375 = vshrl.u32 %v357, 16
      %v377 = vshll.u32 %v357, 16
      %v379 = vrot.slane %v377, 1
      %v380 = vor.u32 %v375, %v379
      %v382 = vshll.u32 %v369, 16
      %v384 = vrot.slane %v382, 1
      %v385 = vsel %vm373, %v380, %v384
      %v387 = vshrl.u32 %v358, 16
      %v389 = vshll.u32 %v358, 16
      %v391 = vrot.slane %v389, 1
      %v392 = vor.u32 %v387, %v391
      %v394 = vshll.u32 %v370, 16
      %v396 = vrot.slane %v394, 1
      %v397 = vsel %vm373, %v392, %v396
      %v399 = vshrl.u32 %v359, 16
      %v401 = vshll.u32 %v359, 16
      %v403 = vrot.slane %v401, 1
      %v404 = vor.u32 %v399, %v403
      %v406 = vshll.u32 %v371, 16
      %v408 = vrot.slane %v406, 1
      %v409 = vsel %vm373, %v404, %v408
      %v411 = vshrl.u32 %v360, 16
      %v413 = vshll.u32 %v360, 16
      %v415 = vrot.slane %v413, 1
      %v416 = vor.u32 %v411, %v415
      %v418 = vshll.u32 %v372, 16
      %v420 = vrot.slane %v418, 1
      %v421 = vsel %vm373, %v416, %v420
      %422 = vrot.lane.b32.xlu0 %v385, 32
      %v423 = vpop.permute.xlu0 %422
      %424 = vrot.lane.b32.xlu0 %v397, 32
      %v425 = vpop.permute.xlu0 %424
      %426 = vrot.lane.b32.xlu0 %v409, 32
      %v427 = vpop.permute.xlu0 %426
      %428 = vrot.lane.b32.xlu0 %v421, 32
      %v429 = vpop.permute.xlu0 %428
      %vm430 = vcmask 1046528
      %v431 = vrot.slane %v357, 1
      %v432 = vrot.slane %v369, 1
      %v433 = vsel %vm430, %v431, %v432
      %v434 = vrot.slane %v358, 1
      %v435 = vrot.slane %v370, 1
      %v436 = vsel %vm430, %v434, %v435
      %v437 = vrot.slane %v359, 1
      %v438 = vrot.slane %v371, 1
      %v439 = vsel %vm430, %v437, %v438
      %v440 = vrot.slane %v360, 1
      %v441 = vrot.slane %v372, 1
      %v442 = vsel %vm430, %v440, %v441
      %443 = vrot.lane.b32.xlu0 %v433, 64
      %v444 = vpop.permute.xlu0 %443
      %445 = vrot.lane.b32.xlu0 %v436, 64
      %v446 = vpop.permute.xlu0 %445
      %447 = vrot.lane.b32.xlu0 %v439, 64
      %v448 = vpop.permute.xlu0 %447
      %449 = vrot.lane.b32.xlu0 %v442, 64
      %v450 = vpop.permute.xlu0 %449
      %v453 = vunpack.c.l.b16 %v335
      %v454 = vunpack.c.l.b16 %v336
      %v455 = vpack.c.b16 %v454, %v453
      %456 = vrot.lane.b32.xlu0 %v358, 96
      %v457 = vpop.permute.xlu0 %456
      %458 = vrot.lane.b32.xlu0 %v359, 96
      %v459 = vpop.permute.xlu0 %458
      %460 = vrot.lane.b32.xlu0 %v360, 96
      %v461 = vpop.permute.xlu0 %460
      %462 = vrot.lane.b32.xlu0 %v455, 96
      %v463 = vpop.permute.xlu0 %462
      %v465 = vunpack.c.l.b16 %v337
      %v466 = vpack.c.b16 %v465, %v465
      %v468 = vshrl.u32 %v455, 16
      %v470 = vshll.u32 %v455, 16
      %v472 = vrot.slane %v470, 1
      %v473 = vor.u32 %v468, %v472
      %v475 = vshll.u32 %v466, 16
      %v477 = vrot.slane %v475, 1
      %v478 = vsel %vm373, %v473, %v477
      %v479 = vrot.slane %v455, 1
      %v480 = vrot.slane %v466, 1
      %v481 = vsel %vm430, %v479, %v480
      %482 = vrot.lane.b32.xlu0 %v436, 32
      %v483 = vpop.permute.xlu0 %482
      %484 = vrot.lane.b32.xlu0 %v439, 32
      %v485 = vpop.permute.xlu0 %484
      %486 = vrot.lane.b32.xlu0 %v442, 32
      %v487 = vpop.permute.xlu0 %486
      %488 = vrot.lane.b32.xlu0 %v481, 32
      %v489 = vpop.permute.xlu0 %488
      %v492 = vunpack.c.l.b16 %v338
      %v493 = vunpack.c.l.b16 %v339
      %v494 = vpack.c.b16 %v493, %v492
      %495 = vrot.lane.b32.xlu0 %v359, 64
      %v496 = vpop.permute.xlu0 %495
      %497 = vrot.lane.b32.xlu0 %v360, 64
      %v498 = vpop.permute.xlu0 %497
      %499 = vrot.lane.b32.xlu0 %v455, 64
      %v500 = vpop.permute.xlu0 %499
      %501 = vrot.lane.b32.xlu0 %v494, 64
      %v502 = vpop.permute.xlu0 %501
      %v504 = vunpack.c.l.b16 %v340
      %v505 = vpack.c.b16 %v504, %v504
      %v507 = vshrl.u32 %v494, 16
      %v509 = vshll.u32 %v494, 16
      %v511 = vrot.slane %v509, 1
      %v512 = vor.u32 %v507, %v511
      %v514 = vshll.u32 %v505, 16
      %v516 = vrot.slane %v514, 1
      %v517 = vsel %vm373, %v512, %v516
      %518 = vrot.lane.b32.xlu0 %v409, 96
      %v519 = vpop.permute.xlu0 %518
      %520 = vrot.lane.b32.xlu0 %v421, 96
      %v521 = vpop.permute.xlu0 %520
      %522 = vrot.lane.b32.xlu0 %v478, 96
      %v523 = vpop.permute.xlu0 %522
      %524 = vrot.lane.b32.xlu0 %v517, 96
      %v525 = vpop.permute.xlu0 %524
      %v526 = vrot.slane %v494, 1
      %v527 = vrot.slane %v505, 1
      %v528 = vsel %vm430, %v526, %v527
      %vm529 = vcmask 261120
      %v531 = vsel %vm529, %v357, %v423
      %v533 = vsel %vm529, %v358, %v425
      %v535 = vsel %vm529, %v359, %v427
      %v537 = vsel %vm529, %v360, %v429
      %vm538 = vcmask 523264
      %v540 = vsel %vm538, %v531, %v444
      %v542 = vsel %vm538, %v533, %v446
      %v544 = vsel %vm538, %v535, %v448
      %v546 = vsel %vm538, %v537, %v450
      %vm547 = vcmask 785408
      %v549 = vsel %vm547, %v540, %v457
      %v552 = vsel %vm547, %v542, %v459
      %v555 = vsel %vm547, %v544, %v461
      %v558 = vsel %vm547, %v546, %v463
      %v562 = vsel %vm529, %v397, %v483
      %v565 = vsel %vm529, %v409, %v485
      %v568 = vsel %vm529, %v421, %v487
      %v571 = vsel %vm529, %v478, %v489
      %v573 = vsel %vm538, %v562, %v496
      %v575 = vsel %vm538, %v565, %v498
      %v577 = vsel %vm538, %v568, %v500
      %v579 = vsel %vm538, %v571, %v502
      %v581 = vsel %vm547, %v573, %v519
      %v584 = vsel %vm547, %v575, %v521
      %v587 = vsel %vm547, %v577, %v523
      %v590 = vsel %vm547, %v579, %v525
      %v592 = vld [vmem:[%s2] sm:$0xf]
      %v593 = vld [vmem:[%s2 + $0x4] sm:$0xf]
      %v594 = vld [vmem:[%s2 + $0x8] sm:$0xf]
      %v595 = vld [vmem:[%s2 + $0xc] sm:$0xf]
      %v596 = vld [vmem:[%s2 + $0x10] sm:$0xf]
      %v597 = vld [vmem:[%s2 + $0x14] sm:$0xf]
      %v598 = vld [vmem:[%s2 + $0x18] sm:$0xf]
      %v599 = vld [vmem:[%s2 + $0x1c] sm:$0xf]
      %v600 = vld [vmem:[%s2 + $0x20] sm:$0xf]
      %v601 = vld [vmem:[%s2 + $0x24] sm:$0xf]
      %v602 = vld [vmem:[%s2 + $0x28] sm:$0xf]
      %v603 = vld [vmem:[%s2 + $0x2c] sm:$0xf]
      %v604 = vld [vmem:[%s2 + $0x30] sm:$0xf]
      %v605 = vld [vmem:[%s2 + $0x34] sm:$0xf]
      %v606 = vld [vmem:[%s2 + $0x38] sm:$0xf]
      %v607 = vld [vmem:[%s2 + $0x3c] sm:$0xf]
      %v608 = vld [vmem:[%s2 + $0x40] sm:$0xf]
      %v609 = vld [vmem:[%s2 + $0x44] sm:$0xf]
      %v610 = vld [vmem:[%s2 + $0x48] sm:$0xf]
      %v611 = vld [vmem:[%s2 + $0x4c] sm:$0xf]
      %v612 = vld [vmem:[%s2 + $0x50] sm:$0xf]
      %v613 = vld [vmem:[%s2 + $0x54] sm:$0xf]
      %v614 = vld [vmem:[%s2 + $0x58] sm:$0xf]
      %v615 = vld [vmem:[%s2 + $0x5c] sm:$0xf]
      %v616 = vld [vmem:[%s2 + $0x60] sm:$0xf]
      %v617 = vld [vmem:[%s2 + $0x64] sm:$0xf]
      %v618 = vld [vmem:[%s2 + $0x68] sm:$0xf]
      %v619 = vld [vmem:[%s2 + $0x6c] sm:$0xf]
      %v620 = vld [vmem:[%s2 + $0x70] sm:$0xf]
      %v621 = vld [vmem:[%s2 + $0x74] sm:$0xf]
      %v622 = vld [vmem:[%s2 + $0x78] sm:$0xf]
      %v623 = vld [vmem:[%s2 + $0x7c] sm:$0xf]
      %v624 = vld [vmem:[%s2 + $0x80] sm:$0xf]
      %v625 = vld [vmem:[%s2 + $0x84] sm:$0xf]
      %v626 = vld [vmem:[%s2 + $0x88] sm:$0xf]
      %v627 = vld [vmem:[%s2 + $0x8c] sm:$0xf]
      %v628 = vld [vmem:[%s312] sm:$0xf]
      %v629 = vld [vmem:[%s312 + $0x4] sm:$0xf]
      %v630 = vld [vmem:[%s312 + $0x8] sm:$0x1]
      %v631 = vld [vmem:[%s312 + $0xc] sm:$0xf]
      %v632 = vld [vmem:[%s312 + $0x10] sm:$0xf]
      %v633 = vld [vmem:[%s312 + $0x14] sm:$0x1]
      %v634 = vld [vmem:[%s312 + $0x18] sm:$0xf]
      %v635 = vld [vmem:[%s312 + $0x1c] sm:$0xf]
      %v636 = vld [vmem:[%s312 + $0x20] sm:$0x1]
      %v637 = vld [vmem:[%s312 + $0x24] sm:$0xf]
      %v638 = vld [vmem:[%s312 + $0x28] sm:$0xf]
      %v639 = vld [vmem:[%s312 + $0x2c] sm:$0x1]
      %v640 = vld [vmem:[%s312 + $0x30] sm:$0xf]
      %v641 = vld [vmem:[%s312 + $0x34] sm:$0xf]
      %v642 = vld [vmem:[%s312 + $0x38] sm:$0x1]
      %v643 = vld [vmem:[%s312 + $0x3c] sm:$0xf]
      %v644 = vld [vmem:[%s312 + $0x40] sm:$0xf]
      %v645 = vld [vmem:[%s312 + $0x44] sm:$0x1]
      %v654 = vunpack.c.l.b16 %v628
      %v655 = vunpack.c.l.b16 %v629
      %v656 = vunpack.c.l.b16 %v631
      %v657 = vunpack.c.l.b16 %v632
      %v658 = vunpack.c.l.b16 %v634
      %v659 = vunpack.c.l.b16 %v635
      %v660 = vunpack.c.l.b16 %v637
      %v661 = vunpack.c.l.b16 %v638
      %v662 = vpack.c.b16 %v655, %v654
      %v663 = vpack.c.b16 %v657, %v656
      %v664 = vpack.c.b16 %v659, %v658
      %v665 = vpack.c.b16 %v661, %v660
      %v670 = vunpack.c.l.b16 %v630
      %v671 = vunpack.c.l.b16 %v633
      %v672 = vunpack.c.l.b16 %v636
      %v673 = vunpack.c.l.b16 %v639
      %v674 = vpack.c.b16 %v670, %v670
      %v675 = vpack.c.b16 %v671, %v671
      %v676 = vpack.c.b16 %v672, %v672
      %v677 = vpack.c.b16 %v673, %v673
      %v679 = vshrl.u32 %v662, 16
      %v681 = vshll.u32 %v662, 16
      %v683 = vrot.slane %v681, 1
      %v684 = vor.u32 %v679, %v683
      %v686 = vshll.u32 %v674, 16
      %v688 = vrot.slane %v686, 1
      %v689 = vsel %vm373, %v684, %v688
      %v691 = vshrl.u32 %v663, 16
      %v693 = vshll.u32 %v663, 16
      %v695 = vrot.slane %v693, 1
      %v696 = vor.u32 %v691, %v695
      %v698 = vshll.u32 %v675, 16
      %v700 = vrot.slane %v698, 1
      %v701 = vsel %vm373, %v696, %v700
      %v703 = vshrl.u32 %v664, 16
      %v705 = vshll.u32 %v664, 16
      %v707 = vrot.slane %v705, 1
      %v708 = vor.u32 %v703, %v707
      %v710 = vshll.u32 %v676, 16
      %v712 = vrot.slane %v710, 1
      %v713 = vsel %vm373, %v708, %v712
      %v715 = vshrl.u32 %v665, 16
      %v717 = vshll.u32 %v665, 16
      %v719 = vrot.slane %v717, 1
      %v720 = vor.u32 %v715, %v719
      %v722 = vshll.u32 %v677, 16
      %v724 = vrot.slane %v722, 1
      %v725 = vsel %vm373, %v720, %v724
      %726 = vrot.lane.b32.xlu0 %v689, 16
      %v727 = vpop.permute.xlu0 %726
      %728 = vrot.lane.b32.xlu0 %v701, 16
      %v729 = vpop.permute.xlu0 %728
      %730 = vrot.lane.b32.xlu0 %v713, 16
      %v731 = vpop.permute.xlu0 %730
      %732 = vrot.lane.b32.xlu0 %v725, 16
      %v733 = vpop.permute.xlu0 %732
      %v734 = vrot.slane %v662, 1
      %v735 = vrot.slane %v674, 1
      %v736 = vsel %vm430, %v734, %v735
      %v737 = vrot.slane %v663, 1
      %v738 = vrot.slane %v675, 1
      %v739 = vsel %vm430, %v737, %v738
      %v740 = vrot.slane %v664, 1
      %v741 = vrot.slane %v676, 1
      %v742 = vsel %vm430, %v740, %v741
      %v743 = vrot.slane %v665, 1
      %v744 = vrot.slane %v677, 1
      %v745 = vsel %vm430, %v743, %v744
      %746 = vrot.lane.b32.xlu0 %v736, 32
      %v747 = vpop.permute.xlu0 %746
      %748 = vrot.lane.b32.xlu0 %v739, 32
      %v749 = vpop.permute.xlu0 %748
      %750 = vrot.lane.b32.xlu0 %v742, 32
      %v751 = vpop.permute.xlu0 %750
      %752 = vrot.lane.b32.xlu0 %v745, 32
      %v753 = vpop.permute.xlu0 %752
      %v756 = vunpack.c.l.b16 %v640
      %v757 = vunpack.c.l.b16 %v641
      %v758 = vpack.c.b16 %v757, %v756
      %759 = vrot.lane.b32.xlu0 %v663, 48
      %v760 = vpop.permute.xlu0 %759
      %761 = vrot.lane.b32.xlu0 %v664, 48
      %v762 = vpop.permute.xlu0 %761
      %763 = vrot.lane.b32.xlu0 %v665, 48
      %v764 = vpop.permute.xlu0 %763
      %765 = vrot.lane.b32.xlu0 %v758, 48
      %v766 = vpop.permute.xlu0 %765
      %v768 = vunpack.c.l.b16 %v642
      %v769 = vpack.c.b16 %v768, %v768
      %v771 = vshrl.u32 %v758, 16
      %v773 = vshll.u32 %v758, 16
      %v775 = vrot.slane %v773, 1
      %v776 = vor.u32 %v771, %v775
      %v778 = vshll.u32 %v769, 16
      %v780 = vrot.slane %v778, 1
      %v781 = vsel %vm373, %v776, %v780
      %782 = vrot.lane.b32.xlu0 %v701, 64
      %v783 = vpop.permute.xlu0 %782
      %784 = vrot.lane.b32.xlu0 %v713, 64
      %v785 = vpop.permute.xlu0 %784
      %786 = vrot.lane.b32.xlu0 %v725, 64
      %v787 = vpop.permute.xlu0 %786
      %788 = vrot.lane.b32.xlu0 %v781, 64
      %v789 = vpop.permute.xlu0 %788
      %v790 = vrot.slane %v758, 1
      %v791 = vrot.slane %v769, 1
      %v792 = vsel %vm430, %v790, %v791
      %793 = vrot.lane.b32.xlu0 %v739, 80
      %v794 = vpop.permute.xlu0 %793
      %795 = vrot.lane.b32.xlu0 %v742, 80
      %v796 = vpop.permute.xlu0 %795
      %797 = vrot.lane.b32.xlu0 %v745, 80
      %v798 = vpop.permute.xlu0 %797
      %799 = vrot.lane.b32.xlu0 %v792, 80
      %v800 = vpop.permute.xlu0 %799
      %v803 = vunpack.c.l.b16 %v643
      %v804 = vunpack.c.l.b16 %v644
      %v805 = vpack.c.b16 %v804, %v803
      %806 = vrot.lane.b32.xlu0 %v664, 96
      %v807 = vpop.permute.xlu0 %806
      %808 = vrot.lane.b32.xlu0 %v665, 96
      %v809 = vpop.permute.xlu0 %808
      %810 = vrot.lane.b32.xlu0 %v758, 96
      %v811 = vpop.permute.xlu0 %810
      %812 = vrot.lane.b32.xlu0 %v805, 96
      %v813 = vpop.permute.xlu0 %812
      %v815 = vunpack.c.l.b16 %v645
      %v816 = vpack.c.b16 %v815, %v815
      %v818 = vshrl.u32 %v805, 16
      %v820 = vshll.u32 %v805, 16
      %v822 = vrot.slane %v820, 1
      %v823 = vor.u32 %v818, %v822
      %v825 = vshll.u32 %v816, 16
      %v827 = vrot.slane %v825, 1
      %v828 = vsel %vm373, %v823, %v827
      %829 = vrot.lane.b32.xlu0 %v713, 112
      %v830 = vpop.permute.xlu0 %829
      %831 = vrot.lane.b32.xlu0 %v725, 112
      %v832 = vpop.permute.xlu0 %831
      %833 = vrot.lane.b32.xlu0 %v781, 112
      %v834 = vpop.permute.xlu0 %833
      %835 = vrot.lane.b32.xlu0 %v828, 112
      %v836 = vpop.permute.xlu0 %835
      %v837 = vrot.slane %v805, 1
      %v838 = vrot.slane %v816, 1
      %v839 = vsel %vm430, %v837, %v838
      %vm840 = vcmask 130048
      %v842 = vsel %vm840, %v662, %v727
      %v844 = vsel %vm840, %v663, %v729
      %v846 = vsel %vm840, %v664, %v731
      %v848 = vsel %vm840, %v665, %v733
      %v850 = vsel %vm529, %v842, %v747
      %v852 = vsel %vm529, %v844, %v749
      %v854 = vsel %vm529, %v846, %v751
      %v856 = vsel %vm529, %v848, %v753
      %vm857 = vcmask 392192
      %v859 = vsel %vm857, %v850, %v760
      %v861 = vsel %vm857, %v852, %v762
      %v863 = vsel %vm857, %v854, %v764
      %v865 = vsel %vm857, %v856, %v766
      %v867 = vsel %vm538, %v859, %v783
      %v869 = vsel %vm538, %v861, %v785
      %v871 = vsel %vm538, %v863, %v787
      %v873 = vsel %vm538, %v865, %v789
      %vm874 = vcmask 654336
      %v876 = vsel %vm874, %v867, %v794
      %v878 = vsel %vm874, %v869, %v796
      %v880 = vsel %vm874, %v871, %v798
      %v882 = vsel %vm874, %v873, %v800
      %v884 = vsel %vm547, %v876, %v807
      %v886 = vsel %vm547, %v878, %v809
      %v888 = vsel %vm547, %v880, %v811
      %v890 = vsel %vm547, %v882, %v813
      %vm891 = vcmask 916480
      %v893 = vsel %vm891, %v884, %v830
      %v896 = vsel %vm891, %v886, %v832
      %v899 = vsel %vm891, %v888, %v834
      %v902 = vsel %vm891, %v890, %v836
      %v904 = vld [vmem:[%s3] sm:$0xf]
      %v905 = vld [vmem:[%s3 + $0x4] sm:$0xf]
      %v906 = vld [vmem:[%s3 + $0x8] sm:$0xf]
      %v907 = vld [vmem:[%s3 + $0xc] sm:$0xf]
      %v908 = vld [vmem:[%s3 + $0x10] sm:$0xf]
      %v909 = vld [vmem:[%s3 + $0x14] sm:$0xf]
      %v910 = vld [vmem:[%s3 + $0x18] sm:$0xf]
      %v911 = vld [vmem:[%s3 + $0x1c] sm:$0xf]
      %v912 = vld [vmem:[%s3 + $0x20] sm:$0xf]
      %v913 = vld [vmem:[%s3 + $0x24] sm:$0xf]
      %v914 = vld [vmem:[%s3 + $0x28] sm:$0xf]
      %v915 = vld [vmem:[%s3 + $0x2c] sm:$0xf]
      %v916 = vld [vmem:[%s3 + $0x30] sm:$0xf]
      %v917 = vld [vmem:[%s3 + $0x34] sm:$0xf]
      %v918 = vld [vmem:[%s3 + $0x38] sm:$0xf]
      %v919 = vld [vmem:[%s3 + $0x3c] sm:$0xf]
      %v920 = vld [vmem:[%s3 + $0x40] sm:$0xf]
      %v921 = vld [vmem:[%s3 + $0x44] sm:$0xf]
      %v940 = vunpack.c.l.b16 %v904
      %v941 = vunpack.c.l.b16 %v905
      %v942 = vunpack.c.l.b16 %v906
      %v943 = vunpack.c.l.b16 %v907
      %v944 = vunpack.c.l.b16 %v908
      %v945 = vunpack.c.l.b16 %v909
      %v946 = vunpack.c.l.b16 %v910
      %v947 = vunpack.c.l.b16 %v911
      %v948 = vunpack.c.l.b16 %v912
      %v949 = vunpack.c.l.b16 %v913
      %v950 = vunpack.c.l.b16 %v914
      %v951 = vunpack.c.l.b16 %v915
      %v952 = vunpack.c.l.b16 %v916
      %v953 = vunpack.c.l.b16 %v917
      %v954 = vunpack.c.l.b16 %v918
      %v955 = vunpack.c.l.b16 %v919
      %v956 = vunpack.c.l.b16 %v920
      %v957 = vunpack.c.l.b16 %v921
      %v958 = vpack.c.b16 %v941, %v940
      %v959 = vpack.c.b16 %v943, %v942
      %v960 = vpack.c.b16 %v945, %v944
      %v961 = vpack.c.b16 %v947, %v946
      %v962 = vpack.c.b16 %v949, %v948
      %v963 = vpack.c.b16 %v951, %v950
      %v964 = vpack.c.b16 %v953, %v952
      %v965 = vpack.c.b16 %v955, %v954
      %v966 = vpack.c.b16 %v957, %v956
      %v977 = vsel %vm840, %v742, 0
      %v980 = vsel %vm840, %v745, 0
      %v983 = vsel %vm840, %v792, 0
      %v986 = vsel %vm840, %v839, 0
      %988 = vmatprep.subr.bf16.mxu0 0
      %989 = vmatpush1.bf16.msra.mxu0 %v965
      %990 = vmatprep.subr.bf16.mxu0 0
      %991 = vmatpush1.bf16.msra.mxu0 %v964
      %992 = vmatprep.subr.bf16.mxu0 0
      %993 = vmatpush1.bf16.msra.mxu0 %v963
      %994 = vmatprep.subr.bf16.mxu0 0
      %995 = vmatpush1.bf16.msra.mxu0 %v962
      %996 = vmatprep.subr.bf16.mxu0 0
      %997 = vmatpush1.bf16.msra.mxu0 %v961
      %998 = vmatprep.subr.bf16.mxu0 0
      %999 = vmatpush1.bf16.msra.mxu0 %v960
      %1000 = vmatprep.subr.bf16.mxu0 0
      %1001 = vmatpush1.bf16.msra.mxu0 %v959
      %1002 = vmatprep.subr.bf16.mxu0 0
      %1003 = vmatpush1.bf16.msra.mxu0 %v958
      %1004 = vmatprep.subr.bf16.mxu0 0
      %1005 = vmatpush2.bf16.msra.mxu0 0
      %1006 = vmatprep.subr.bf16.mxu0 0
      %1007 = vmatpush2.bf16.msra.mxu0 0
      %1008 = vmatprep.subr.bf16.mxu0 0
      %1009 = vmatpush2.bf16.msra.mxu0 0
      %1010 = vmatprep.subr.bf16.mxu0 0
      %1011 = vmatpush2.bf16.msra.mxu0 0
      %1012 = vmatprep.subr.bf16.mxu0 0
      %1013 = vmatpush2.bf16.msra.mxu0 0
      %1014 = vmatprep.subr.bf16.mxu0 0
      %1015 = vmatpush2.bf16.msra.mxu0 0
      %1016 = vmatprep.subr.bf16.mxu0 0
      %1017 = vmatpush2.bf16.msra.mxu0 0
      %1018 = vmatprep.subr.bf16.mxu0 0
      %1019 = vmatpush2.bf16.msra.mxu0 %v966
      %1020 = vmatprep.mubr.bf16.mxu0 %v977
      %1021 = vmatmul.mubr.bf16.gmra.mxu0 %v893
      %v1022 = vpop.f32.mrf.mxu0
      %v1023 = vadd.f32 0.0, %v1022
      %v1024 = vpop.f32.mrf.mxu0
      %v1025 = vpop.f32.mrf.mxu0
      %v1026 = vadd.f32 0.0, %v1025
      %v1027 = vpop.f32.mrf.mxu0
      %1028 = vmatprep.mubr.bf16.mxu0 %v980
      %1029 = vmatmul.mubr.bf16.gmra.mxu0 %v896
      %v1030 = vpop.f32.mrf.mxu0
      %v1031 = vadd.f32 0.0, %v1030
      %v1032 = vpop.f32.mrf.mxu0
      %v1033 = vpop.f32.mrf.mxu0
      %v1034 = vadd.f32 0.0, %v1033
      %v1035 = vpop.f32.mrf.mxu0
      %1036 = vmatprep.mubr.bf16.mxu0 %v983
      %1037 = vmatmul.mubr.bf16.gmra.mxu0 %v899
      %v1038 = vpop.f32.mrf.mxu0
      %v1039 = vadd.f32 0.0, %v1038
      %v1040 = vpop.f32.mrf.mxu0
      %v1041 = vpop.f32.mrf.mxu0
      %v1042 = vadd.f32 0.0, %v1041
      %v1043 = vpop.f32.mrf.mxu0
      %1044 = vmatprep.mubr.bf16.mxu0 %v986
      %1045 = vmatmul.mubr.bf16.gmra.mxu0 %v902
      %v1046 = vpop.f32.mrf.mxu0
      %v1047 = vadd.f32 0.0, %v1046
      %v1048 = vpop.f32.mrf.mxu0
      %v1049 = vpop.f32.mrf.mxu0
      %v1050 = vadd.f32 0.0, %v1049
      %v1051 = vpop.f32.mrf.mxu0
      %1052 = vdwg.mxu0
      %v1089 = vunpack.c.l.b16 %v592
      %v1090 = vunpack.c.l.b16 %v593
      %v1091 = vunpack.c.l.b16 %v594
      %v1092 = vunpack.c.l.b16 %v595
      %v1093 = vunpack.c.l.b16 %v596
      %v1094 = vunpack.c.l.b16 %v597
      %v1095 = vunpack.c.l.b16 %v598
      %v1096 = vunpack.c.l.b16 %v599
      %v1097 = vunpack.c.l.b16 %v600
      %v1098 = vunpack.c.l.b16 %v601
      %v1099 = vunpack.c.l.b16 %v602
      %v1100 = vunpack.c.l.b16 %v603
      %v1101 = vunpack.c.l.b16 %v604
      %v1102 = vunpack.c.l.b16 %v605
      %v1103 = vunpack.c.l.b16 %v606
      %v1104 = vunpack.c.l.b16 %v607
      %v1105 = vunpack.c.l.b16 %v608
      %v1106 = vunpack.c.l.b16 %v609
      %v1107 = vunpack.c.l.b16 %v610
      %v1108 = vunpack.c.l.b16 %v611
      %v1109 = vunpack.c.l.b16 %v612
      %v1110 = vunpack.c.l.b16 %v613
      %v1111 = vunpack.c.l.b16 %v614
      %v1112 = vunpack.c.l.b16 %v615
      %v1113 = vunpack.c.l.b16 %v616
      %v1114 = vunpack.c.l.b16 %v617
      %v1115 = vunpack.c.l.b16 %v618
      %v1116 = vunpack.c.l.b16 %v619
      %v1117 = vunpack.c.l.b16 %v620
      %v1118 = vunpack.c.l.b16 %v621
      %v1119 = vunpack.c.l.b16 %v622
      %v1120 = vunpack.c.l.b16 %v623
      %v1121 = vunpack.c.l.b16 %v624
      %v1122 = vunpack.c.l.b16 %v625
      %v1123 = vunpack.c.l.b16 %v626
      %v1124 = vunpack.c.l.b16 %v627
      %v1125 = vpack.c.b16 %v1090, %v1089
      %v1126 = vpack.c.b16 %v1092, %v1091
      %v1127 = vpack.c.b16 %v1094, %v1093
      %v1128 = vpack.c.b16 %v1096, %v1095
      %v1129 = vpack.c.b16 %v1098, %v1097
      %v1130 = vpack.c.b16 %v1100, %v1099
      %v1131 = vpack.c.b16 %v1102, %v1101
      %v1132 = vpack.c.b16 %v1104, %v1103
      %v1133 = vpack.c.b16 %v1106, %v1105
      %v1134 = vpack.c.b16 %v1108, %v1107
      %v1135 = vpack.c.b16 %v1110, %v1109
      %v1136 = vpack.c.b16 %v1112, %v1111
      %v1137 = vpack.c.b16 %v1114, %v1113
      %v1138 = vpack.c.b16 %v1116, %v1115
      %v1139 = vpack.c.b16 %v1118, %v1117
      %v1140 = vpack.c.b16 %v1120, %v1119
      %v1141 = vpack.c.b16 %v1122, %v1121
      %v1142 = vpack.c.b16 %v1124, %v1123
      %v1162 = vsel %vm529, %v439, 0
      %v1165 = vsel %vm529, %v442, 0
      %v1168 = vsel %vm529, %v481, 0
      %v1171 = vsel %vm529, %v528, 0
      %1173 = vmatprep.subr.bf16.mxu0 0
      %1174 = vmatpush1.bf16.msra.mxu0 %v1132
      %1175 = vmatprep.subr.bf16.mxu0 0
      %1176 = vmatpush1.bf16.msra.mxu0 %v1131
      %1177 = vmatprep.subr.bf16.mxu0 0
      %1178 = vmatpush1.bf16.msra.mxu0 %v1130
      %1179 = vmatprep.subr.bf16.mxu0 0
      %1180 = vmatpush1.bf16.msra.mxu0 %v1129
      %1181 = vmatprep.subr.bf16.mxu0 0
      %1182 = vmatpush1.bf16.msra.mxu0 %v1128
      %1183 = vmatprep.subr.bf16.mxu0 0
      %1184 = vmatpush1.bf16.msra.mxu0 %v1127
      %1185 = vmatprep.subr.bf16.mxu0 0
      %1186 = vmatpush1.bf16.msra.mxu0 %v1126
      %1187 = vmatprep.subr.bf16.mxu0 0
      %1188 = vmatpush1.bf16.msra.mxu0 %v1125
      %1189 = vmatprep.subr.bf16.mxu0 0
      %1190 = vmatpush2.bf16.msra.mxu0 %v1140
      %1191 = vmatprep.subr.bf16.mxu0 0
      %1192 = vmatpush2.bf16.msra.mxu0 %v1139
      %1193 = vmatprep.subr.bf16.mxu0 0
      %1194 = vmatpush2.bf16.msra.mxu0 %v1138
      %1195 = vmatprep.subr.bf16.mxu0 0
      %1196 = vmatpush2.bf16.msra.mxu0 %v1137
      %1197 = vmatprep.subr.bf16.mxu0 0
      %1198 = vmatpush2.bf16.msra.mxu0 %v1136
      %1199 = vmatprep.subr.bf16.mxu0 0
      %1200 = vmatpush2.bf16.msra.mxu0 %v1135
      %1201 = vmatprep.subr.bf16.mxu0 0
      %1202 = vmatpush2.bf16.msra.mxu0 %v1134
      %1203 = vmatprep.subr.bf16.mxu0 0
      %1204 = vmatpush2.bf16.msra.mxu0 %v1133
      %1205 = vmatprep.mubr.bf16.mxu0 %v581
      %1206 = vmatmul.mubr.bf16.gmra.mxu0 %v549
      %v1207 = vpop.f32.mrf.mxu0
      %v1208 = vadd.f32 %v1023, %v1207
      %v1209 = vpop.f32.mrf.mxu0
      %v1210 = vpop.f32.mrf.mxu0
      %v1211 = vadd.f32 %v1026, %v1210
      %v1212 = vpop.f32.mrf.mxu0
      %1213 = vmatprep.mubr.bf16.mxu0 %v584
      %1214 = vmatmul.mubr.bf16.gmra.mxu0 %v552
      %v1215 = vpop.f32.mrf.mxu0
      %v1216 = vadd.f32 %v1031, %v1215
      %v1217 = vpop.f32.mrf.mxu0
      %v1218 = vpop.f32.mrf.mxu0
      %v1219 = vadd.f32 %v1034, %v1218
      %v1220 = vpop.f32.mrf.mxu0
      %1221 = vmatprep.mubr.bf16.mxu0 %v587
      %1222 = vmatmul.mubr.bf16.gmra.mxu0 %v555
      %v1223 = vpop.f32.mrf.mxu0
      %v1224 = vadd.f32 %v1039, %v1223
      %v1225 = vpop.f32.mrf.mxu0
      %v1226 = vpop.f32.mrf.mxu0
      %v1227 = vadd.f32 %v1042, %v1226
      %v1228 = vpop.f32.mrf.mxu0
      %1229 = vmatprep.mubr.bf16.mxu0 %v590
      %1230 = vmatmul.mubr.bf16.gmra.mxu0 %v558
      %v1231 = vpop.f32.mrf.mxu0
      %v1232 = vadd.f32 %v1047, %v1231
      %v1233 = vpop.f32.mrf.mxu0
      %v1234 = vpop.f32.mrf.mxu0
      %v1235 = vadd.f32 %v1050, %v1234
      %v1236 = vpop.f32.mrf.mxu0
      %1237 = vdwg.mxu0
      %1238 = vmatprep.subr.bf16.mxu0 0
      %1239 = vmatpush1.bf16.msra.mxu0 0
      %1240 = vmatprep.subr.bf16.mxu0 0
      %1241 = vmatpush1.bf16.msra.mxu0 0
      %1242 = vmatprep.subr.bf16.mxu0 0
      %1243 = vmatpush1.bf16.msra.mxu0 0
      %1244 = vmatprep.subr.bf16.mxu0 0
      %1245 = vmatpush1.bf16.msra.mxu0 0
      %1246 = vmatprep.subr.bf16.mxu0 0
      %1247 = vmatpush1.bf16.msra.mxu0 0
      %1248 = vmatprep.subr.bf16.mxu0 0
      %1249 = vmatpush1.bf16.msra.mxu0 0
      %1250 = vmatprep.subr.bf16.mxu0 0
      %1251 = vmatpush1.bf16.msra.mxu0 %v1142
      %1252 = vmatprep.subr.bf16.mxu0 0
      %1253 = vmatpush1.bf16.msra.mxu0 %v1141
      %1254 = vmatprep.subr.bf16.mxu0 0
      %1255 = vmatpush2.bf16.msra.mxu0 0
      %1256 = vmatprep.subr.bf16.mxu0 0
      %1257 = vmatpush2.bf16.msra.mxu0 0
      %1258 = vmatprep.subr.bf16.mxu0 0
      %1259 = vmatpush2.bf16.msra.mxu0 0
      %1260 = vmatprep.subr.bf16.mxu0 0
      %1261 = vmatpush2.bf16.msra.mxu0 0
      %1262 = vmatprep.subr.bf16.mxu0 0
      %1263 = vmatpush2.bf16.msra.mxu0 0
      %1264 = vmatprep.subr.bf16.mxu0 0
      %1265 = vmatpush2.bf16.msra.mxu0 0
      %1266 = vmatprep.subr.bf16.mxu0 0
      %1267 = vmatpush2.bf16.msra.mxu0 0
      %1268 = vmatprep.subr.bf16.mxu0 0
      %1269 = vmatpush2.bf16.msra.mxu0 0
      %1270 = vmatprep.mubr.bf16.mxu0 0
      %1271 = vmatmul.mubr.bf16.gmra.mxu0 %v1162
      %v1272 = vpop.f32.mrf.mxu0
      %v1273 = vadd.f32 %v1208, %v1272
      %v1274 = vpop.f32.mrf.mxu0
      %v1275 = vpop.f32.mrf.mxu0
      %v1276 = vadd.f32 %v1211, %v1275
      %v1277 = vpop.f32.mrf.mxu0
      %1278 = vmatprep.mubr.bf16.mxu0 0
      %1279 = vmatmul.mubr.bf16.gmra.mxu0 %v1165
      %v1280 = vpop.f32.mrf.mxu0
      %v1281 = vadd.f32 %v1216, %v1280
      %v1282 = vpop.f32.mrf.mxu0
      %v1283 = vpop.f32.mrf.mxu0
      %v1284 = vadd.f32 %v1219, %v1283
      %v1285 = vpop.f32.mrf.mxu0
      %1286 = vmatprep.mubr.bf16.mxu0 0
      %1287 = vmatmul.mubr.bf16.gmra.mxu0 %v1168
      %v1288 = vpop.f32.mrf.mxu0
      %v1289 = vadd.f32 %v1224, %v1288
      %v1290 = vpop.f32.mrf.mxu0
      %v1291 = vpop.f32.mrf.mxu0
      %v1292 = vadd.f32 %v1227, %v1291
      %v1293 = vpop.f32.mrf.mxu0
      %1294 = vmatprep.mubr.bf16.mxu0 0
      %1295 = vmatmul.mubr.bf16.gmra.mxu0 %v1171
      %v1296 = vpop.f32.mrf.mxu0
      %v1297 = vadd.f32 %v1232, %v1296
      %v1298 = vpop.f32.mrf.mxu0
      %v1299 = vpop.f32.mrf.mxu0
      %v1300 = vadd.f32 %v1235, %v1299
      %v1301 = vpop.f32.mrf.mxu0
      %1302 = vdwg.mxu0
      %v1303 = vld [vmem:[%s4] sm:$0x1]
      %v1305 = vlaneseq
      %v1306 = vshrl.u32 %v1305, 7
      %v1307 = vsub.s32 0, %v1306
      %v1308 = vrot.slane %v1303, %v1307
      %v1310 = vmul.f32 %v1273, %v1308
      %v1311 = vmul.f32 %v1276, %v1308
      %v1312 = vmul.f32 %v1281, %v1308
      %v1313 = vmul.f32 %v1284, %v1308
      %v1314 = vmul.f32 %v1289, %v1308
      %v1315 = vmul.f32 %v1292, %v1308
      %v1316 = vmul.f32 %v1297, %v1308
      %v1317 = vmul.f32 %v1300, %v1308
      %v1318 = vld [vmem:[%s5] sm:$0x1]
      %v1320 = vlaneseq
      %v1321 = vshrl.u32 %v1320, 7
      %v1322 = vsub.s32 0, %v1321
      %v1323 = vrot.slane %v1318, %v1322
      %v1325 = vadd.f32 %v1310, %v1323
      %v1326 = vadd.f32 %v1311, %v1323
      %v1327 = vadd.f32 %v1312, %v1323
      %v1328 = vadd.f32 %v1313, %v1323
      %v1329 = vadd.f32 %v1314, %v1323
      %v1330 = vadd.f32 %v1315, %v1323
      %v1331 = vadd.f32 %v1316, %v1323
      %v1332 = vadd.f32 %v1317, %v1323
      %vm1333 = vcmp.gt.f32.partialorder %v1325, 0.0
      %vm1334 = vcmp.gt.f32.partialorder %v1326, 0.0
      %vm1335 = vcmp.gt.f32.partialorder %v1327, 0.0
      %vm1336 = vcmp.gt.f32.partialorder %v1328, 0.0
      %vm1337 = vcmp.gt.f32.partialorder %v1329, 0.0
      %vm1338 = vcmp.gt.f32.partialorder %v1330, 0.0
      %vm1339 = vcmp.gt.f32.partialorder %v1331, 0.0
      %vm1340 = vcmp.gt.f32.partialorder %v1332, 0.0
      %v1341 = vmul.f32 %v1325, 0.01
      %v1342 = vmul.f32 %v1326, 0.01
      %v1343 = vmul.f32 %v1327, 0.01
      %v1344 = vmul.f32 %v1328, 0.01
      %v1345 = vmul.f32 %v1329, 0.01
      %v1346 = vmul.f32 %v1330, 0.01
      %v1347 = vmul.f32 %v1331, 0.01
      %v1348 = vmul.f32 %v1332, 0.01
      %v1349 = vsel %vm1333, %v1325, %v1341
      %v1350 = vsel %vm1334, %v1326, %v1342
      %v1351 = vsel %vm1335, %v1327, %v1343
      %v1352 = vsel %vm1336, %v1328, %v1344
      %v1353 = vsel %vm1337, %v1329, %v1345
      %v1354 = vsel %vm1338, %v1330, %v1346
      %v1355 = vsel %vm1339, %v1331, %v1347
      %v1356 = vsel %vm1340, %v1332, %v1348
      %v1357 = vpack.c.bf16 %v1350, %v1349
      %v1358 = vpack.c.bf16 %v1352, %v1351
      %v1359 = vpack.c.bf16 %v1354, %v1353
      %v1360 = vpack.c.bf16 %v1356, %v1355
      %v1365 = vunpack.c.l.b16 %v1357
      %v1366 = vunpack.c.h.b16 %v1357
      %v1367 = vunpack.c.l.b16 %v1358
      %v1368 = vunpack.c.h.b16 %v1358
      %v1369 = vunpack.c.l.b16 %v1359
      %v1370 = vunpack.c.h.b16 %v1359
      %v1371 = vunpack.c.l.b16 %v1360
      %v1372 = vunpack.c.h.b16 %v1360
      %v1373 = vpack.c.b16 %v1365, %v1365
      %v1374 = vpack.c.b16 %v1366, %v1366
      %v1375 = vpack.c.b16 %v1367, %v1367
      %v1376 = vpack.c.b16 %v1368, %v1368
      %v1377 = vpack.c.b16 %v1369, %v1369
      %v1378 = vpack.c.b16 %v1370, %v1370
      %v1379 = vpack.c.b16 %v1371, %v1371
      %v1380 = vpack.c.b16 %v1372, %v1372
      %vm1389 = vcmask 257024
      %1390 = vst.msk [vmem:[%s321] sm:$0xf] %vm1389, %v1373
      %1391 = vst.msk [vmem:[%s321 + $0x4] sm:$0xf] %vm1389, %v1374
      %1392 = vst.msk [vmem:[%s321 + $0x8] sm:$0xf] %vm1389, %v1375
      %1393 = vst.msk [vmem:[%s321 + $0xc] sm:$0xf] %vm1389, %v1376
      %1394 = vst.msk [vmem:[%s321 + $0x10] sm:$0xf] %vm1389, %v1377
      %1395 = vst.msk [vmem:[%s321 + $0x14] sm:$0xf] %vm1389, %v1378
      %1396 = vst.msk [vmem:[%s321 + $0x18] sm:$0xf] %vm1389, %v1379
      %1397 = vst.msk [vmem:[%s321 + $0x1c] sm:$0xf] %vm1389, %v1380
      %p1398 = scmp.lt.s32.totalorder %s21, 1
      %s1399 = scalar_select %p1398, %s21, 1
      %p1400 = scmp.lt.s32.totalorder %s22, 3
      %s1401 = scalar_select %p1400, %s22, 3
      %s1402 = smul.addr %s1401, 8
      %s1403 = smul.addr %s1399, 32
      %s1404 = sadd.s32 %s1402, %s1403
      %s1405 = smul.addr %s1404, 4
      %s1406 = scalar_lea.vmem %s6, %s1405
      // Predicated region
      $region45: #{upsample_bn_forward.4} parent=43 // pred_check
        %p1407 = pneg %p189
      $region46: #{upsample_bn_forward.4} parent=43 // pred_check_branch
        %1409 = sbr.rel (%p1407) target = $region48
      $region47: #{upsample_bn_forward.4} parent=43 // pred_region
        _
      $region48: #{upsample_bn_forward.4} parent=43 // pred_fallthru
        _
    $region44: #{upsample_bn_forward.4} parent=5 // pred_fallthru
      _
    %p1410 = scmp.le.s32.totalorder 2, %s12
    // Predicated region
    $region49: #{upsample_bn_forward.4} parent=5 // pred_check
      %p1411 = pneg %p1410
    $region50: #{upsample_bn_forward.4} parent=5 // pred_check_branch
      %1413 = sbr.rel (%p1411) target = $region52
    $region51: #{upsample_bn_forward.4} parent=5 // pred_region
      %s1414 = ssub.s32 %s12, 2
      // Predicated region
      $region53: #{upsample_bn_forward.4} parent=51 // pred_check
        %p1415 = pneg %p195
      $region54: #{upsample_bn_forward.4} parent=51 // pred_check_branch
        %1417 = sbr.rel (%p1415) target = $region56
      $region55: #{upsample_bn_forward.4} parent=51 // pred_region
        %p1418 = scmp.lt.s32.totalorder %s23, 1
        %s1419 = scalar_select %p1418, %s23, 1
        %p1420 = scmp.lt.s32.totalorder %s24, 3
        %s1421 = scalar_select %p1420, %s24, 3
        %s1422 = smul.addr %s1421, 8
        %s1423 = smul.addr %s1419, 32
        %s1424 = sadd.s32 %s1422, %s1423
        %s1425 = smul.addr %s1424, 4
        %s1426 = scalar_lea.vmem %s6, %s1425
      $region56: #{upsample_bn_forward.4} parent=51 // pred_fallthru
        _
    $region52: #{upsample_bn_forward.4} parent=5 // pred_fallthru
      _
  $region6: #{upsample_bn_forward.4} parent=0 // loop_footer
    %s16 = sadd.s32 1, %s12
  $region7: #{upsample_bn_forward.4} parent=0 // loop_footer_branch
    %11 = sbr.rel target = $region3
  $region8: #{upsample_bn_forward.4} parent=0 // loop_exit
    _

</llo_original>
